<compile_context>
chip_gen: v6e
topology: v6e:2x2x1
jax: 0.10.0
libtpu: 0.0.40
codegen_flags: <defaults>
</compile_context>

<pallas_src>
import math
from functools import partial

import jax
import jax.numpy as jnp
from jax.experimental import pallas as pl
from jax.experimental.pallas import tpu as pltpu


# ---------------------------------------------------------------------------
# Rotary frequency table (tiny, computed once at build time).
# ---------------------------------------------------------------------------
def rotary_freqs(seq_len, dim, theta=10000.0):
    inv_freq = 1.0 / theta ** (jnp.arange(0, dim, 2, dtype=jnp.float32) / dim)
    t = jnp.arange(seq_len, dtype=jnp.float32)
    freqs = jnp.einsum("i,j->ij", t, inv_freq)              # (seq, dim/2)
    return jnp.concatenate([freqs, freqs], axis=-1)          # (seq, dim)


# ---------------------------------------------------------------------------
# Fused kernel (single grid step; batch unrolled statically).
#   c_ref   : (B, Cin, Ts)   conditioning sequence, NCT (as given by caller)
#   x_ref   : (B, Cin, Tx)   main sequence, NCT
#   xq_ref  : (B, Tx, Cin)   x in channels-last (time-major) for the Q matmul
#   wkv_ref : (3Cq, Cin)     rows = [Wk, Wk_perm, Wv]       (conv layout)
#   bkv_ref : (3Cq, 1)
#   wq_ref  : (Cin, 2Cq)     cols = [Wq, Wq_perm]           (x @ W layout)
#   bq_ref  : (1, 2Cq)
#   rotq_ref: (2, Tq, Cq)    time-major [cos, sign*sin], pre-scaled 1/sqrt(K)
#   rotk_ref: (2, Cq, T)     channel-major [cos, sign*sin] for all K/V rows
#   wo_ref  : (OutC, Cq)     output projection (conv layout)
#   bo_ref  : (OutC, 1)
#   o_ref   : (B, OutC, Tq)  final NCT output (rows t_s: only)
#   xc_scr  : (Cin, T)       scratch: assembled [c, x] NCT slab per batch
#   attn_scr: (Cq, Tq)       scratch: per-head PV results, channel-major
# ---------------------------------------------------------------------------
def fused_cmha_kernel(c_ref, x_ref, xq_ref, wkv_ref, bkv_ref, wq_ref, bq_ref,
                      rotq_ref, rotk_ref, wo_ref, bo_ref, o_ref,
                      xc_scr, attn_scr, *, n_heads, k_channels, t_s, batch):
    f32 = jnp.float32
    kc = k_channels
    cq = n_heads * kc

    wkv = wkv_ref[...]            # (3Cq, Cin)
    bkv = bkv_ref[...]            # (3Cq, 1)
    wq = wq_ref[...]              # (Cin, 2Cq)
    bq = bq_ref[...]              # (1, 2Cq)
    cos_q, sin_q = rotq_ref[0], rotq_ref[1]   # (Tq, Cq), already * 1/sqrt(K)
    cos_k, sin_k = rotk_ref[0], rotk_ref[1]   # (Cq, T)
    wo = wo_ref[...]              # (OutC, Cq)
    bo = bo_ref[...]              # (OutC, 1)

    for b in range(batch):                               # B is tiny -> unroll
        # Assemble cat((c, x), time) in VMEM (replaces wrapper concat+transpose).
        xc_scr[:, 0:t_s] = c_ref[b]                      # (Cin, Ts)
        xc_scr[:, t_s:] = x_ref[b]                       # (Cin, Tx)
        xc = xc_scr[...]                                 # (Cin, T)

        # ONE channel-major projection matmul -> [K_a | K_b(perm) | V] over T.
        kv = jnp.dot(wkv, xc, preferred_element_type=f32) + bkv      # (3Cq, T)
        # rotary: t*cos + rotate_half(t)*sin, with rotate_half pre-folded into
        # the permuted weight rows and the sign into sin_k.
        k = kv[0:cq, :] * cos_k + kv[cq:2 * cq, :] * sin_k            # (Cq, T)
        v = kv[2 * cq:3 * cq, :]                                      # (Cq, T)

        # ONE time-major projection matmul -> [Q_a | Q_b(perm)], query rows only.
        q2 = jnp.dot(xq_ref[b], wq, preferred_element_type=f32) + bq  # (Tq,2Cq)
        q = q2[:, 0:cq] * cos_q + q2[:, cq:2 * cq] * sin_q            # (Tq, Cq)

        # Heads are few (static unroll).  Scores are plain MXU matmuls because
        # Q is time-major and K/V are channel-major (K^T comes for free).
        for h in range(n_heads):
            lo = h * kc
            qh = q[:, lo:lo + kc]                         # (Tq, kc)
            kh = k[lo:lo + kc, :]                         # (kc, T)
            vh = v[lo:lo + kc, :]                         # (kc, T)
            s = jnp.dot(qh, kh, preferred_element_type=f32)    # (Tq, T)
            m = jnp.max(s, axis=-1, keepdims=True)
            e = jnp.exp(s - m)
            den = jnp.sum(e, axis=-1, keepdims=True)
            p = e * pl.reciprocal(den, approx=True)            # EUP slot
            # dropout: p_dropout = 0.0 -> identity (eval semantics)
            # TODO(synk): attn_mask (masked_fill with -1e4) not wired in; the
            # module is exercised with attn_mask=None.
            # head-merge: PV lands channel-major at 8-row aligned offsets.
            attn_scr[lo:lo + kc, :] = jax.lax.dot_general(
                vh, p, (((1,), (1,)), ((), ())),
                preferred_element_type=f32)                    # (kc, Tq)

        # ONE output-projection matmul, channel-major -> NCT block directly.
        o_ref[b] = jnp.dot(wo, attn_scr[...],
                           preferred_element_type=f32) + bo    # (OutC, Tq)


# ---------------------------------------------------------------------------
# Builder: bakes permuted weights + rotary tables once, returns jitted fwd.
# ---------------------------------------------------------------------------
def build_conditional_mha(params, n_heads, t_s, t_x):
    Cq, Cin = params["wq"].shape           # conv weight (Cout, Cin)
    OutC = params["wo"].shape[0]
    K = Cq // n_heads
    assert K % 2 == 0, "rotate_half folding requires an even per-head dim"
    T = t_s + t_x
    Tq = t_x

    # rotate_half output-channel permutation (within each head) and sign.
    ch = jnp.arange(Cq)
    kk = ch % K
    perm = (ch // K) * K + (kk + K // 2) % K
    sign = jnp.where(kk < K // 2, -1.0, 1.0).astype(jnp.float32)     # (Cq,)

    # K/V projection, conv layout (rows = output channels): [Wk, Wk_perm, Wv].
    w_kv = jnp.concatenate(
        [params["wk"], params["wk"][perm, :], params["wv"]], axis=0)  # (3Cq,Cin)
    b_kv = jnp.concatenate(
        [params["bk"], params["bk"][perm], params["bv"]]).reshape(3 * Cq, 1)

    # Q projection, x @ W layout (cols = output channels): [Wq, Wq_perm].
    wq_xw = params["wq"].T                                            # (Cin,Cq)
    w_q2 = jnp.concatenate([wq_xw, wq_xw[:, perm]], axis=1)           # (Cin,2Cq)
    b_q2 = jnp.concatenate([params["bq"], params["bq"][perm]]).reshape(1, 2 * Cq)

    # rotary tables: cat(key_emb(t_s), query_emb(t_x)) along positions,
    # replicated per head, sign folded into sin, 1/sqrt(K) folded into the
    # query tables (computed ONCE here, not per forward call).
    pos = jnp.concatenate([rotary_freqs(t_s, K), rotary_freqs(t_x, K)], axis=0)
    cos_full = jnp.tile(jnp.cos(pos), (1, n_heads)).astype(jnp.float32)   # (T,Cq)
    sin_full = (jnp.tile(jnp.sin(pos), (1, n_heads)) * sign[None, :]
                ).astype(jnp.float32)                                     # (T,Cq)
    scale = 1.0 / math.sqrt(K)
    rot_q = jnp.stack([cos_full[t_s:] * scale,
                       sin_full[t_s:] * scale], axis=0)        # (2, Tq, Cq)
    rot_k = jnp.stack([cos_full.T, sin_full.T], axis=0)         # (2, Cq, T)

    w_o = params["wo"]                                          # (OutC, Cq)
    b_o = params["bo"].reshape(OutC, 1)

    def forward(x, c):
        B = x.shape[0]
        # Only remaining wrapper layout op: tiny swapaxes of x for a
        # time-major Q matmul (avoids any in-kernel transpose).
        xq = jnp.swapaxes(x, 1, 2)                              # (B, Tx, Cin)
        kernel = partial(fused_cmha_kernel, n_heads=n_heads,
                         k_channels=K, t_s=t_s, batch=B)
        # Single grid step: all per-batch work lives inside the kernel.
        return pl.pallas_call(
            kernel,
            out_shape=jax.ShapeDtypeStruct((B, OutC, Tq), jnp.float32),
            grid=(1,),
            in_specs=[
                pl.BlockSpec((B, Cin, t_s), lambda i: (0, 0, 0)),   # c (NCT)
                pl.BlockSpec((B, Cin, Tq), lambda i: (0, 0, 0)),    # x (NCT)
                pl.BlockSpec((B, Tq, Cin), lambda i: (0, 0, 0)),    # x (TC)
                pl.BlockSpec((3 * Cq, Cin), lambda i: (0, 0)),      # w_kv
                pl.BlockSpec((3 * Cq, 1), lambda i: (0, 0)),        # b_kv
                pl.BlockSpec((Cin, 2 * Cq), lambda i: (0, 0)),      # w_q2
                pl.BlockSpec((1, 2 * Cq), lambda i: (0, 0)),        # b_q2
                pl.BlockSpec((2, Tq, Cq), lambda i: (0, 0, 0)),     # rot_q
                pl.BlockSpec((2, Cq, T), lambda i: (0, 0, 0)),      # rot_k
                pl.BlockSpec((OutC, Cq), lambda i: (0, 0)),         # w_o
                pl.BlockSpec((OutC, 1), lambda i: (0, 0)),          # b_o
            ],
            out_specs=pl.BlockSpec((B, OutC, Tq), lambda i: (0, 0, 0)),
            scratch_shapes=[pltpu.VMEM((Cin, T), jnp.float32),
                            pltpu.VMEM((Cq, Tq), jnp.float32)],
            compiler_params=pltpu.CompilerParams(
                dimension_semantics=("arbitrary",)),
        )(c, x, xq, w_kv, b_kv, w_q2, b_q2, rot_q, rot_k, w_o, b_o)

    return jax.jit(forward)


# ---------------------------------------------------------------------------
# Pure-JAX reference (mirrors the PyTorch forward) for correctness check.
# ---------------------------------------------------------------------------
def reference_forward(x, c, params, n_heads):
    Ts, Tx = c.shape[2], x.shape[2]
    Cq = params["wq"].shape[0]
    K = Cq // n_heads
    pos = jnp.concatenate([rotary_freqs(Ts, K), rotary_freqs(Tx, K)], axis=0)
    cos, sin = jnp.cos(pos), jnp.sin(pos)

    xc = jnp.concatenate([c, x], axis=-1)               # (B, Cin, T)
    B, _, T = xc.shape

    def conv1x1(w, b, inp):
        return jnp.einsum("oc,bct->bot", w, inp) + b[None, :, None]

    q = conv1x1(params["wq"], params["bq"], xc)
    k = conv1x1(params["wk"], params["bk"], xc)
    v = conv1x1(params["wv"], params["bv"], xc)

    def split_heads(t):                                  # (B,H*K,T)->(B,H,T,K)
        return jnp.transpose(t.reshape(B, n_heads, K, T), (0, 1, 3, 2))

    q, k, v = map(split_heads, (q, k, v))

    def rope(t):
        x1, x2 = t[..., : K // 2], t[..., K // 2:]
        rh = jnp.concatenate([-x2, x1], axis=-1)
        return t * cos + rh * sin

    q, k = rope(q), rope(k)
    scores = jnp.einsum("bhtk,bhsk->bhts", q, k) / math.sqrt(K)
    p = jax.nn.softmax(scores, axis=-1)
    out = jnp.einsum("bhts,bhsk->bhtk", p, v)
    out = jnp.transpose(out, (0, 1, 3, 2)).reshape(B, Cq, T)
    y = jnp.einsum("oc,bct->bot", params["wo"], out) + params["bo"][None, :, None]
    return y[:, :, Ts:]


# ---------------------------------------------------------------------------
def xavier_uniform(key, shape):
    fan_out, fan_in = shape
    bound = math.sqrt(6.0 / (fan_in + fan_out))
    return jax.random.uniform(key, shape, jnp.float32, -bound, bound)


if __name__ == "__main__":
    # module config: channels=32, out_channels=32, n_heads=4 -> k_channels=8
    channels, out_channels, n_heads = 32, 32, 4
    B, Tx, Ts = 2, 8, 8

    key = jax.random.PRNGKey(0)
    ks = jax.random.split(key, 10)
    params = {
        "wq": xavier_uniform(ks[0], (channels, channels)),
        "bq": jax.random.uniform(ks[1], (channels,), jnp.float32, -0.1, 0.1),
        "wk": xavier_uniform(ks[2], (channels, channels)),
        "bk": jax.random.uniform(ks[3], (channels,), jnp.float32, -0.1, 0.1),
        "wv": xavier_uniform(ks[4], (channels, channels)),
        "bv": jax.random.uniform(ks[5], (channels,), jnp.float32, -0.1, 0.1),
        "wo": xavier_uniform(ks[6], (out_channels, channels)),
        "bo": jax.random.uniform(ks[7], (out_channels,), jnp.float32, -0.1, 0.1),
    }
    x = jax.random.normal(ks[8], (B, channels, Tx), jnp.float32)
    c = jax.random.normal(ks[9], (B, channels, Ts), jnp.float32)

    fwd = build_conditional_mha(params, n_heads, Ts, Tx)
    out = jax.block_until_ready(fwd(x, c))

    ref = reference_forward(x, c, params, n_heads)
    assert out.shape == (B, out_channels, Tx), out.shape
    # approx reciprocal in the softmax -> ~1e-3-level relative error budget
    assert jnp.allclose(out, ref, atol=5e-3, rtol=5e-3), (
        float(jnp.max(jnp.abs(out - ref))))

    print("KERNEL_OK")
</pallas_src>

<mosaic_0001>
module attributes {stable_mosaic.version = 11 : i64} {
  func.func @fused_cmha_kernel(%arg0: i32, %arg1: memref<2x32x8xf32, #tpu.memory_space<vmem>>, %arg2: memref<2x32x8xf32, #tpu.memory_space<vmem>>, %arg3: memref<2x8x32xf32, #tpu.memory_space<vmem>>, %arg4: memref<96x32xf32, #tpu.memory_space<vmem>>, %arg5: memref<96x1xf32, #tpu.memory_space<vmem>>, %arg6: memref<32x64xf32, #tpu.memory_space<vmem>>, %arg7: memref<1x64xf32, #tpu.memory_space<vmem>>, %arg8: memref<2x8x32xf32, #tpu.memory_space<vmem>>, %arg9: memref<2x32x16xf32, #tpu.memory_space<vmem>>, %arg10: memref<32x32xf32, #tpu.memory_space<vmem>>, %arg11: memref<32x1xf32, #tpu.memory_space<vmem>>, %arg12: memref<2x32x8xf32, #tpu.memory_space<vmem>>, %arg13: memref<32x16xf32, #tpu.memory_space<vmem>>, %arg14: memref<32x8xf32, #tpu.memory_space<vmem>>) attributes {dimension_semantics = [#tpu.dimension_semantics<arbitrary>], iteration_bounds = array<i64: 1>, scalar_prefetch = 0 : i64, scratch_operands = 2 : i64, tpu.core_type = #tpu.core_type<tc>, window_params = [{pipeline_mode = #tpu.pipeline_mode<synchronous>, transform_indices = @transform_0, window_bounds = array<i64: 2, 32, 8>}, {pipeline_mode = #tpu.pipeline_mode<synchronous>, transform_indices = @transform_1, window_bounds = array<i64: 2, 32, 8>}, {pipeline_mode = #tpu.pipeline_mode<synchronous>, transform_indices = @transform_2, window_bounds = array<i64: 2, 8, 32>}, {pipeline_mode = #tpu.pipeline_mode<synchronous>, transform_indices = @transform_3, window_bounds = array<i64: 96, 32>}, {pipeline_mode = #tpu.pipeline_mode<synchronous>, transform_indices = @transform_4, window_bounds = array<i64: 96, 1>}, {pipeline_mode = #tpu.pipeline_mode<synchronous>, transform_indices = @transform_5, window_bounds = array<i64: 32, 64>}, {pipeline_mode = #tpu.pipeline_mode<synchronous>, transform_indices = @transform_6, window_bounds = array<i64: 1, 64>}, {pipeline_mode = #tpu.pipeline_mode<synchronous>, transform_indices = @transform_7, window_bounds = array<i64: 2, 8, 32>}, {pipeline_mode = #tpu.pipeline_mode<synchronous>, transform_indices = @transform_8, window_bounds = array<i64: 2, 32, 16>}, {pipeline_mode = #tpu.pipeline_mode<synchronous>, transform_indices = @transform_9, window_bounds = array<i64: 32, 32>}, {pipeline_mode = #tpu.pipeline_mode<synchronous>, transform_indices = @transform_10, window_bounds = array<i64: 32, 1>}, {pipeline_mode = #tpu.pipeline_mode<synchronous>, transform_indices = @transform_11, window_bounds = array<i64: 2, 32, 8>}]} {
    %c0 = arith.constant 0 : index
    %c0_0 = arith.constant 0 : index
    %0 = vector.load %arg4[%c0, %c0_0] : memref<96x32xf32, #tpu.memory_space<vmem>>, vector<96x32xf32>
    %c0_1 = arith.constant 0 : index
    %c0_2 = arith.constant 0 : index
    %1 = vector.load %arg5[%c0_1, %c0_2] : memref<96x1xf32, #tpu.memory_space<vmem>>, vector<96x1xf32>
    %c0_3 = arith.constant 0 : index
    %c0_4 = arith.constant 0 : index
    %2 = vector.load %arg6[%c0_3, %c0_4] : memref<32x64xf32, #tpu.memory_space<vmem>>, vector<32x64xf32>
    %c0_5 = arith.constant 0 : index
    %c0_6 = arith.constant 0 : index
    %3 = vector.load %arg7[%c0_5, %c0_6] : memref<1x64xf32, #tpu.memory_space<vmem>>, vector<1x64xf32>
    %c0_7 = arith.constant 0 : index
    %c0_8 = arith.constant 0 : index
    %c0_9 = arith.constant 0 : index
    %4 = vector.load %arg8[%c0_7, %c0_8, %c0_9] : memref<2x8x32xf32, #tpu.memory_space<vmem>>, vector<1x8x32xf32>
    %5 = vector.shape_cast %4 : vector<1x8x32xf32> to vector<8x32xf32>
    %c1 = arith.constant 1 : index
    %c0_10 = arith.constant 0 : index
    %c0_11 = arith.constant 0 : index
    %6 = vector.load %arg8[%c1, %c0_10, %c0_11] : memref<2x8x32xf32, #tpu.memory_space<vmem>>, vector<1x8x32xf32>
    %7 = vector.shape_cast %6 : vector<1x8x32xf32> to vector<8x32xf32>
    %c0_12 = arith.constant 0 : index
    %c0_13 = arith.constant 0 : index
    %c0_14 = arith.constant 0 : index
    %8 = vector.load %arg9[%c0_12, %c0_13, %c0_14] : memref<2x32x16xf32, #tpu.memory_space<vmem>>, vector<1x32x16xf32>
    %9 = vector.shape_cast %8 : vector<1x32x16xf32> to vector<32x16xf32>
    %c1_15 = arith.constant 1 : index
    %c0_16 = arith.constant 0 : index
    %c0_17 = arith.constant 0 : index
    %10 = vector.load %arg9[%c1_15, %c0_16, %c0_17] : memref<2x32x16xf32, #tpu.memory_space<vmem>>, vector<1x32x16xf32>
    %11 = vector.shape_cast %10 : vector<1x32x16xf32> to vector<32x16xf32>
    %c0_18 = arith.constant 0 : index
    %c0_19 = arith.constant 0 : index
    %12 = vector.load %arg10[%c0_18, %c0_19] : memref<32x32xf32, #tpu.memory_space<vmem>>, vector<32x32xf32>
    %c0_20 = arith.constant 0 : index
    %c0_21 = arith.constant 0 : index
    %13 = vector.load %arg11[%c0_20, %c0_21] : memref<32x1xf32, #tpu.memory_space<vmem>>, vector<32x1xf32>
    %c0_22 = arith.constant 0 : index
    %c0_23 = arith.constant 0 : index
    %c0_24 = arith.constant 0 : index
    %14 = vector.load %arg1[%c0_22, %c0_23, %c0_24] : memref<2x32x8xf32, #tpu.memory_space<vmem>>, vector<1x32x8xf32>
    %15 = vector.shape_cast %14 : vector<1x32x8xf32> to vector<32x8xf32>
    %c0_25 = arith.constant 0 : index
    %c0_26 = arith.constant 0 : index
    %16 = vector.load %arg13[%c0_25, %c0_26] : memref<32x16xf32, #tpu.memory_space<vmem>>, vector<32x8xf32>
    tpu.vector_store %arg13[%c0_25, %c0_26], %15 {strides = array<i32>} : memref<32x16xf32, #tpu.memory_space<vmem>>, vector<32x8xf32>,
    %c0_27 = arith.constant 0 : index
    %c0_28 = arith.constant 0 : index
    %c0_29 = arith.constant 0 : index
    %17 = vector.load %arg2[%c0_27, %c0_28, %c0_29] : memref<2x32x8xf32, #tpu.memory_space<vmem>>, vector<1x32x8xf32>
    %18 = vector.shape_cast %17 : vector<1x32x8xf32> to vector<32x8xf32>
    %c0_30 = arith.constant 0 : index
    %c8 = arith.constant 8 : index
    %19 = vector.load %arg13[%c0_30, %c8] : memref<32x16xf32, #tpu.memory_space<vmem>>, vector<32x8xf32>
    tpu.vector_store %arg13[%c0_30, %c8], %18 {strides = array<i32>} : memref<32x16xf32, #tpu.memory_space<vmem>>, vector<32x8xf32>,
    %c0_31 = arith.constant 0 : index
    %c0_32 = arith.constant 0 : index
    %20 = vector.load %arg13[%c0_31, %c0_32] : memref<32x16xf32, #tpu.memory_space<vmem>>, vector<32x16xf32>
    %cst = arith.constant dense<0.000000e+00> : vector<96x16xf32>
    %21 = tpu.matmul %0, %20, %cst {dimension_numbers = #tpu.dot_dimension_numbers<[1], [0], [0], [1], [0, 0, 1, 1], [], []>} : vector<96x32xf32>, vector<32x16xf32>, vector<96x16xf32> -> vector<96x16xf32>
    %22 = vector.broadcast %1 : vector<96x1xf32> to vector<96x16xf32>
    %23 = arith.addf %21, %22 : vector<96x16xf32>
    %24 = vector.extract_strided_slice %23 {offsets = [0, 0], sizes = [32, 16], strides = [1, 1]} : vector<96x16xf32> to vector<32x16xf32>
    %25 = arith.mulf %24, %9 : vector<32x16xf32>
    %26 = vector.extract_strided_slice %23 {offsets = [32, 0], sizes = [32, 16], strides = [1, 1]} : vector<96x16xf32> to vector<32x16xf32>
    %27 = arith.mulf %26, %11 : vector<32x16xf32>
    %28 = arith.addf %25, %27 : vector<32x16xf32>
    %29 = vector.extract_strided_slice %23 {offsets = [64, 0], sizes = [32, 16], strides = [1, 1]} : vector<96x16xf32> to vector<32x16xf32>
    %c0_33 = arith.constant 0 : index
    %c0_34 = arith.constant 0 : index
    %c0_35 = arith.constant 0 : index
    %30 = vector.load %arg3[%c0_33, %c0_34, %c0_35] : memref<2x8x32xf32, #tpu.memory_space<vmem>>, vector<1x8x32xf32>
    %31 = vector.shape_cast %30 : vector<1x8x32xf32> to vector<8x32xf32>
    %cst_36 = arith.constant dense<0.000000e+00> : vector<8x64xf32>
    %32 = tpu.matmul %31, %2, %cst_36 {dimension_numbers = #tpu.dot_dimension_numbers<[1], [0], [0], [1], [0, 0, 1, 1], [], []>} : vector<8x32xf32>, vector<32x64xf32>, vector<8x64xf32> -> vector<8x64xf32>
    %33 = vector.broadcast %3 : vector<1x64xf32> to vector<8x64xf32>
    %34 = arith.addf %32, %33 : vector<8x64xf32>
    %35 = vector.extract_strided_slice %34 {offsets = [0, 0], sizes = [8, 32], strides = [1, 1]} : vector<8x64xf32> to vector<8x32xf32>
    %36 = arith.mulf %35, %5 : vector<8x32xf32>
    %37 = vector.extract_strided_slice %34 {offsets = [0, 32], sizes = [8, 32], strides = [1, 1]} : vector<8x64xf32> to vector<8x32xf32>
    %38 = arith.mulf %37, %7 : vector<8x32xf32>
    %39 = arith.addf %36, %38 : vector<8x32xf32>
    %40 = vector.extract_strided_slice %39 {offsets = [0, 0], sizes = [8, 8], strides = [1, 1]} : vector<8x32xf32> to vector<8x8xf32>
    %41 = vector.extract_strided_slice %28 {offsets = [0, 0], sizes = [8, 16], strides = [1, 1]} : vector<32x16xf32> to vector<8x16xf32>
    %42 = vector.extract_strided_slice %29 {offsets = [0, 0], sizes = [8, 16], strides = [1, 1]} : vector<32x16xf32> to vector<8x16xf32>
    %cst_37 = arith.constant dense<0.000000e+00> : vector<8x16xf32>
    %43 = tpu.matmul %40, %41, %cst_37 {dimension_numbers = #tpu.dot_dimension_numbers<[1], [0], [0], [1], [0, 0, 1, 1], [], []>} : vector<8x8xf32>, vector<8x16xf32>, vector<8x16xf32> -> vector<8x16xf32>
    %cst_38 = arith.constant dense<0xFF800000> : vector<8xf32>
    %44 = vector.multi_reduction <maximumf>, %43, %cst_38 [1] : vector<8x16xf32> to vector<8xf32>
    %45 = vector.shape_cast %44 : vector<8xf32> to vector<8x1xf32>
    %46 = vector.broadcast %45 : vector<8x1xf32> to vector<8x16xf32>
    %47 = arith.subf %43, %46 : vector<8x16xf32>
    %48 = math.exp %47 : vector<8x16xf32>
    %cst_39 = arith.constant dense<0.000000e+00> : vector<8xf32>
    %49 = vector.multi_reduction <add>, %48, %cst_39 [1] : vector<8x16xf32> to vector<8xf32>
    %50 = vector.shape_cast %49 : vector<8xf32> to vector<8x1xf32>
    %51 = tpu.reciprocal %50 {approx = true} : vector<8x1xf32> -> vector<8x1xf32>
    %52 = vector.broadcast %51 : vector<8x1xf32> to vector<8x16xf32>
    %53 = arith.mulf %48, %52 : vector<8x16xf32>
    %cst_40 = arith.constant dense<0.000000e+00> : vector<8x8xf32>
    %54 = tpu.matmul %42, %53, %cst_40 {dimension_numbers = #tpu.dot_dimension_numbers<[1], [1], [0], [0], [0, 0, 1, 0], [], []>} : vector<8x16xf32>, vector<8x16xf32>, vector<8x8xf32> -> vector<8x8xf32>
    %c0_41 = arith.constant 0 : index
    %c0_42 = arith.constant 0 : index
    %55 = vector.load %arg14[%c0_41, %c0_42] : memref<32x8xf32, #tpu.memory_space<vmem>>, vector<8x8xf32>
    tpu.vector_store %arg14[%c0_41, %c0_42], %54 {strides = array<i32>} : memref<32x8xf32, #tpu.memory_space<vmem>>, vector<8x8xf32>,
    %56 = vector.extract_strided_slice %39 {offsets = [0, 8], sizes = [8, 8], strides = [1, 1]} : vector<8x32xf32> to vector<8x8xf32>
    %57 = vector.extract_strided_slice %28 {offsets = [8, 0], sizes = [8, 16], strides = [1, 1]} : vector<32x16xf32> to vector<8x16xf32>
    %58 = vector.extract_strided_slice %29 {offsets = [8, 0], sizes = [8, 16], strides = [1, 1]} : vector<32x16xf32> to vector<8x16xf32>
    %cst_43 = arith.constant dense<0.000000e+00> : vector<8x16xf32>
    %59 = tpu.matmul %56, %57, %cst_43 {dimension_numbers = #tpu.dot_dimension_numbers<[1], [0], [0], [1], [0, 0, 1, 1], [], []>} : vector<8x8xf32>, vector<8x16xf32>, vector<8x16xf32> -> vector<8x16xf32>
    %cst_44 = arith.constant dense<0xFF800000> : vector<8xf32>
    %60 = vector.multi_reduction <maximumf>, %59, %cst_44 [1] : vector<8x16xf32> to vector<8xf32>
    %61 = vector.shape_cast %60 : vector<8xf32> to vector<8x1xf32>
    %62 = vector.broadcast %61 : vector<8x1xf32> to vector<8x16xf32>
    %63 = arith.subf %59, %62 : vector<8x16xf32>
    %64 = math.exp %63 : vector<8x16xf32>
    %cst_45 = arith.constant dense<0.000000e+00> : vector<8xf32>
    %65 = vector.multi_reduction <add>, %64, %cst_45 [1] : vector<8x16xf32> to vector<8xf32>
    %66 = vector.shape_cast %65 : vector<8xf32> to vector<8x1xf32>
    %67 = tpu.reciprocal %66 {approx = true} : vector<8x1xf32> -> vector<8x1xf32>
    %68 = vector.broadcast %67 : vector<8x1xf32> to vector<8x16xf32>
    %69 = arith.mulf %64, %68 : vector<8x16xf32>
    %cst_46 = arith.constant dense<0.000000e+00> : vector<8x8xf32>
    %70 = tpu.matmul %58, %69, %cst_46 {dimension_numbers = #tpu.dot_dimension_numbers<[1], [1], [0], [0], [0, 0, 1, 0], [], []>} : vector<8x16xf32>, vector<8x16xf32>, vector<8x8xf32> -> vector<8x8xf32>
    %c8_47 = arith.constant 8 : index
    %c0_48 = arith.constant 0 : index
    %71 = vector.load %arg14[%c8_47, %c0_48] : memref<32x8xf32, #tpu.memory_space<vmem>>, vector<8x8xf32>
    tpu.vector_store %arg14[%c8_47, %c0_48], %70 {strides = array<i32>} : memref<32x8xf32, #tpu.memory_space<vmem>>, vector<8x8xf32>,
    %72 = vector.extract_strided_slice %39 {offsets = [0, 16], sizes = [8, 8], strides = [1, 1]} : vector<8x32xf32> to vector<8x8xf32>
    %73 = vector.extract_strided_slice %28 {offsets = [16, 0], sizes = [8, 16], strides = [1, 1]} : vector<32x16xf32> to vector<8x16xf32>
    %74 = vector.extract_strided_slice %29 {offsets = [16, 0], sizes = [8, 16], strides = [1, 1]} : vector<32x16xf32> to vector<8x16xf32>
    %cst_49 = arith.constant dense<0.000000e+00> : vector<8x16xf32>
    %75 = tpu.matmul %72, %73, %cst_49 {dimension_numbers = #tpu.dot_dimension_numbers<[1], [0], [0], [1], [0, 0, 1, 1], [], []>} : vector<8x8xf32>, vector<8x16xf32>, vector<8x16xf32> -> vector<8x16xf32>
    %cst_50 = arith.constant dense<0xFF800000> : vector<8xf32>
    %76 = vector.multi_reduction <maximumf>, %75, %cst_50 [1] : vector<8x16xf32> to vector<8xf32>
    %77 = vector.shape_cast %76 : vector<8xf32> to vector<8x1xf32>
    %78 = vector.broadcast %77 : vector<8x1xf32> to vector<8x16xf32>
    %79 = arith.subf %75, %78 : vector<8x16xf32>
    %80 = math.exp %79 : vector<8x16xf32>
    %cst_51 = arith.constant dense<0.000000e+00> : vector<8xf32>
    %81 = vector.multi_reduction <add>, %80, %cst_51 [1] : vector<8x16xf32> to vector<8xf32>
    %82 = vector.shape_cast %81 : vector<8xf32> to vector<8x1xf32>
    %83 = tpu.reciprocal %82 {approx = true} : vector<8x1xf32> -> vector<8x1xf32>
    %84 = vector.broadcast %83 : vector<8x1xf32> to vector<8x16xf32>
    %85 = arith.mulf %80, %84 : vector<8x16xf32>
    %cst_52 = arith.constant dense<0.000000e+00> : vector<8x8xf32>
    %86 = tpu.matmul %74, %85, %cst_52 {dimension_numbers = #tpu.dot_dimension_numbers<[1], [1], [0], [0], [0, 0, 1, 0], [], []>} : vector<8x16xf32>, vector<8x16xf32>, vector<8x8xf32> -> vector<8x8xf32>
    %c16 = arith.constant 16 : index
    %c0_53 = arith.constant 0 : index
    %87 = vector.load %arg14[%c16, %c0_53] : memref<32x8xf32, #tpu.memory_space<vmem>>, vector<8x8xf32>
    tpu.vector_store %arg14[%c16, %c0_53], %86 {strides = array<i32>} : memref<32x8xf32, #tpu.memory_space<vmem>>, vector<8x8xf32>,
    %88 = vector.extract_strided_slice %39 {offsets = [0, 24], sizes = [8, 8], strides = [1, 1]} : vector<8x32xf32> to vector<8x8xf32>
    %89 = vector.extract_strided_slice %28 {offsets = [24, 0], sizes = [8, 16], strides = [1, 1]} : vector<32x16xf32> to vector<8x16xf32>
    %90 = vector.extract_strided_slice %29 {offsets = [24, 0], sizes = [8, 16], strides = [1, 1]} : vector<32x16xf32> to vector<8x16xf32>
    %cst_54 = arith.constant dense<0.000000e+00> : vector<8x16xf32>
    %91 = tpu.matmul %88, %89, %cst_54 {dimension_numbers = #tpu.dot_dimension_numbers<[1], [0], [0], [1], [0, 0, 1, 1], [], []>} : vector<8x8xf32>, vector<8x16xf32>, vector<8x16xf32> -> vector<8x16xf32>
    %cst_55 = arith.constant dense<0xFF800000> : vector<8xf32>
    %92 = vector.multi_reduction <maximumf>, %91, %cst_55 [1] : vector<8x16xf32> to vector<8xf32>
    %93 = vector.shape_cast %92 : vector<8xf32> to vector<8x1xf32>
    %94 = vector.broadcast %93 : vector<8x1xf32> to vector<8x16xf32>
    %95 = arith.subf %91, %94 : vector<8x16xf32>
    %96 = math.exp %95 : vector<8x16xf32>
    %cst_56 = arith.constant dense<0.000000e+00> : vector<8xf32>
    %97 = vector.multi_reduction <add>, %96, %cst_56 [1] : vector<8x16xf32> to vector<8xf32>
    %98 = vector.shape_cast %97 : vector<8xf32> to vector<8x1xf32>
    %99 = tpu.reciprocal %98 {approx = true} : vector<8x1xf32> -> vector<8x1xf32>
    %100 = vector.broadcast %99 : vector<8x1xf32> to vector<8x16xf32>
    %101 = arith.mulf %96, %100 : vector<8x16xf32>
    %cst_57 = arith.constant dense<0.000000e+00> : vector<8x8xf32>
    %102 = tpu.matmul %90, %101, %cst_57 {dimension_numbers = #tpu.dot_dimension_numbers<[1], [1], [0], [0], [0, 0, 1, 0], [], []>} : vector<8x16xf32>, vector<8x16xf32>, vector<8x8xf32> -> vector<8x8xf32>
    %c24 = arith.constant 24 : index
    %c0_58 = arith.constant 0 : index
    %103 = vector.load %arg14[%c24, %c0_58] : memref<32x8xf32, #tpu.memory_space<vmem>>, vector<8x8xf32>
    tpu.vector_store %arg14[%c24, %c0_58], %102 {strides = array<i32>} : memref<32x8xf32, #tpu.memory_space<vmem>>, vector<8x8xf32>,
    %c0_59 = arith.constant 0 : index
    %c0_60 = arith.constant 0 : index
    %104 = vector.load %arg14[%c0_59, %c0_60] : memref<32x8xf32, #tpu.memory_space<vmem>>, vector<32x8xf32>
    %cst_61 = arith.constant dense<0.000000e+00> : vector<32x8xf32>
    %105 = tpu.matmul %12, %104, %cst_61 {dimension_numbers = #tpu.dot_dimension_numbers<[1], [0], [0], [1], [0, 0, 1, 1], [], []>} : vector<32x32xf32>, vector<32x8xf32>, vector<32x8xf32> -> vector<32x8xf32>
    %106 = vector.broadcast %13 : vector<32x1xf32> to vector<32x8xf32>
    %107 = arith.addf %105, %106 : vector<32x8xf32>
    %c0_62 = arith.constant 0 : index
    %c0_63 = arith.constant 0 : index
    %c0_64 = arith.constant 0 : index
    %108 = vector.load %arg12[%c0_62, %c0_63, %c0_64] : memref<2x32x8xf32, #tpu.memory_space<vmem>>, vector<1x32x8xf32>
    %109 = vector.shape_cast %108 : vector<1x32x8xf32> to vector<32x8xf32>
    %110 = vector.shape_cast %107 : vector<32x8xf32> to vector<1x32x8xf32>
    tpu.vector_store %arg12[%c0_62, %c0_63, %c0_64], %110 {strides = array<i32>} : memref<2x32x8xf32, #tpu.memory_space<vmem>>, vector<1x32x8xf32>,
    %c1_65 = arith.constant 1 : index
    %c0_66 = arith.constant 0 : index
    %c0_67 = arith.constant 0 : index
    %111 = vector.load %arg1[%c1_65, %c0_66, %c0_67] : memref<2x32x8xf32, #tpu.memory_space<vmem>>, vector<1x32x8xf32>
    %112 = vector.shape_cast %111 : vector<1x32x8xf32> to vector<32x8xf32>
    %c0_68 = arith.constant 0 : index
    %c0_69 = arith.constant 0 : index
    %113 = vector.load %arg13[%c0_68, %c0_69] : memref<32x16xf32, #tpu.memory_space<vmem>>, vector<32x8xf32>
    tpu.vector_store %arg13[%c0_68, %c0_69], %112 {strides = array<i32>} : memref<32x16xf32, #tpu.memory_space<vmem>>, vector<32x8xf32>,
    %c1_70 = arith.constant 1 : index
    %c0_71 = arith.constant 0 : index
    %c0_72 = arith.constant 0 : index
    %114 = vector.load %arg2[%c1_70, %c0_71, %c0_72] : memref<2x32x8xf32, #tpu.memory_space<vmem>>, vector<1x32x8xf32>
    %115 = vector.shape_cast %114 : vector<1x32x8xf32> to vector<32x8xf32>
    %c0_73 = arith.constant 0 : index
    %c8_74 = arith.constant 8 : index
    %116 = vector.load %arg13[%c0_73, %c8_74] : memref<32x16xf32, #tpu.memory_space<vmem>>, vector<32x8xf32>
    tpu.vector_store %arg13[%c0_73, %c8_74], %115 {strides = array<i32>} : memref<32x16xf32, #tpu.memory_space<vmem>>, vector<32x8xf32>,
    %c0_75 = arith.constant 0 : index
    %c0_76 = arith.constant 0 : index
    %117 = vector.load %arg13[%c0_75, %c0_76] : memref<32x16xf32, #tpu.memory_space<vmem>>, vector<32x16xf32>
    %cst_77 = arith.constant dense<0.000000e+00> : vector<96x16xf32>
    %118 = tpu.matmul %0, %117, %cst_77 {dimension_numbers = #tpu.dot_dimension_numbers<[1], [0], [0], [1], [0, 0, 1, 1], [], []>} : vector<96x32xf32>, vector<32x16xf32>, vector<96x16xf32> -> vector<96x16xf32>
    %119 = vector.broadcast %1 : vector<96x1xf32> to vector<96x16xf32>
    %120 = arith.addf %118, %119 : vector<96x16xf32>
    %121 = vector.extract_strided_slice %120 {offsets = [0, 0], sizes = [32, 16], strides = [1, 1]} : vector<96x16xf32> to vector<32x16xf32>
    %122 = arith.mulf %121, %9 : vector<32x16xf32>
    %123 = vector.extract_strided_slice %120 {offsets = [32, 0], sizes = [32, 16], strides = [1, 1]} : vector<96x16xf32> to vector<32x16xf32>
    %124 = arith.mulf %123, %11 : vector<32x16xf32>
    %125 = arith.addf %122, %124 : vector<32x16xf32>
    %126 = vector.extract_strided_slice %120 {offsets = [64, 0], sizes = [32, 16], strides = [1, 1]} : vector<96x16xf32> to vector<32x16xf32>
    %c1_78 = arith.constant 1 : index
    %c0_79 = arith.constant 0 : index
    %c0_80 = arith.constant 0 : index
    %127 = vector.load %arg3[%c1_78, %c0_79, %c0_80] : memref<2x8x32xf32, #tpu.memory_space<vmem>>, vector<1x8x32xf32>
    %128 = vector.shape_cast %127 : vector<1x8x32xf32> to vector<8x32xf32>
    %cst_81 = arith.constant dense<0.000000e+00> : vector<8x64xf32>
    %129 = tpu.matmul %128, %2, %cst_81 {dimension_numbers = #tpu.dot_dimension_numbers<[1], [0], [0], [1], [0, 0, 1, 1], [], []>} : vector<8x32xf32>, vector<32x64xf32>, vector<8x64xf32> -> vector<8x64xf32>
    %130 = vector.broadcast %3 : vector<1x64xf32> to vector<8x64xf32>
    %131 = arith.addf %129, %130 : vector<8x64xf32>
    %132 = vector.extract_strided_slice %131 {offsets = [0, 0], sizes = [8, 32], strides = [1, 1]} : vector<8x64xf32> to vector<8x32xf32>
    %133 = arith.mulf %132, %5 : vector<8x32xf32>
    %134 = vector.extract_strided_slice %131 {offsets = [0, 32], sizes = [8, 32], strides = [1, 1]} : vector<8x64xf32> to vector<8x32xf32>
    %135 = arith.mulf %134, %7 : vector<8x32xf32>
    %136 = arith.addf %133, %135 : vector<8x32xf32>
    %137 = vector.extract_strided_slice %136 {offsets = [0, 0], sizes = [8, 8], strides = [1, 1]} : vector<8x32xf32> to vector<8x8xf32>
    %138 = vector.extract_strided_slice %125 {offsets = [0, 0], sizes = [8, 16], strides = [1, 1]} : vector<32x16xf32> to vector<8x16xf32>
    %139 = vector.extract_strided_slice %126 {offsets = [0, 0], sizes = [8, 16], strides = [1, 1]} : vector<32x16xf32> to vector<8x16xf32>
    %cst_82 = arith.constant dense<0.000000e+00> : vector<8x16xf32>
    %140 = tpu.matmul %137, %138, %cst_82 {dimension_numbers = #tpu.dot_dimension_numbers<[1], [0], [0], [1], [0, 0, 1, 1], [], []>} : vector<8x8xf32>, vector<8x16xf32>, vector<8x16xf32> -> vector<8x16xf32>
    %cst_83 = arith.constant dense<0xFF800000> : vector<8xf32>
    %141 = vector.multi_reduction <maximumf>, %140, %cst_83 [1] : vector<8x16xf32> to vector<8xf32>
    %142 = vector.shape_cast %141 : vector<8xf32> to vector<8x1xf32>
    %143 = vector.broadcast %142 : vector<8x1xf32> to vector<8x16xf32>
    %144 = arith.subf %140, %143 : vector<8x16xf32>
    %145 = math.exp %144 : vector<8x16xf32>
    %cst_84 = arith.constant dense<0.000000e+00> : vector<8xf32>
    %146 = vector.multi_reduction <add>, %145, %cst_84 [1] : vector<8x16xf32> to vector<8xf32>
    %147 = vector.shape_cast %146 : vector<8xf32> to vector<8x1xf32>
    %148 = tpu.reciprocal %147 {approx = true} : vector<8x1xf32> -> vector<8x1xf32>
    %149 = vector.broadcast %148 : vector<8x1xf32> to vector<8x16xf32>
    %150 = arith.mulf %145, %149 : vector<8x16xf32>
    %cst_85 = arith.constant dense<0.000000e+00> : vector<8x8xf32>
    %151 = tpu.matmul %139, %150, %cst_85 {dimension_numbers = #tpu.dot_dimension_numbers<[1], [1], [0], [0], [0, 0, 1, 0], [], []>} : vector<8x16xf32>, vector<8x16xf32>, vector<8x8xf32> -> vector<8x8xf32>
    %c0_86 = arith.constant 0 : index
    %c0_87 = arith.constant 0 : index
    %152 = vector.load %arg14[%c0_86, %c0_87] : memref<32x8xf32, #tpu.memory_space<vmem>>, vector<8x8xf32>
    tpu.vector_store %arg14[%c0_86, %c0_87], %151 {strides = array<i32>} : memref<32x8xf32, #tpu.memory_space<vmem>>, vector<8x8xf32>,
    %153 = vector.extract_strided_slice %136 {offsets = [0, 8], sizes = [8, 8], strides = [1, 1]} : vector<8x32xf32> to vector<8x8xf32>
    %154 = vector.extract_strided_slice %125 {offsets = [8, 0], sizes = [8, 16], strides = [1, 1]} : vector<32x16xf32> to vector<8x16xf32>
    %155 = vector.extract_strided_slice %126 {offsets = [8, 0], sizes = [8, 16], strides = [1, 1]} : vector<32x16xf32> to vector<8x16xf32>
    %cst_88 = arith.constant dense<0.000000e+00> : vector<8x16xf32>
    %156 = tpu.matmul %153, %154, %cst_88 {dimension_numbers = #tpu.dot_dimension_numbers<[1], [0], [0], [1], [0, 0, 1, 1], [], []>} : vector<8x8xf32>, vector<8x16xf32>, vector<8x16xf32> -> vector<8x16xf32>
    %cst_89 = arith.constant dense<0xFF800000> : vector<8xf32>
    %157 = vector.multi_reduction <maximumf>, %156, %cst_89 [1] : vector<8x16xf32> to vector<8xf32>
    %158 = vector.shape_cast %157 : vector<8xf32> to vector<8x1xf32>
    %159 = vector.broadcast %158 : vector<8x1xf32> to vector<8x16xf32>
    %160 = arith.subf %156, %159 : vector<8x16xf32>
    %161 = math.exp %160 : vector<8x16xf32>
    %cst_90 = arith.constant dense<0.000000e+00> : vector<8xf32>
    %162 = vector.multi_reduction <add>, %161, %cst_90 [1] : vector<8x16xf32> to vector<8xf32>
    %163 = vector.shape_cast %162 : vector<8xf32> to vector<8x1xf32>
    %164 = tpu.reciprocal %163 {approx = true} : vector<8x1xf32> -> vector<8x1xf32>
    %165 = vector.broadcast %164 : vector<8x1xf32> to vector<8x16xf32>
    %166 = arith.mulf %161, %165 : vector<8x16xf32>
    %cst_91 = arith.constant dense<0.000000e+00> : vector<8x8xf32>
    %167 = tpu.matmul %155, %166, %cst_91 {dimension_numbers = #tpu.dot_dimension_numbers<[1], [1], [0], [0], [0, 0, 1, 0], [], []>} : vector<8x16xf32>, vector<8x16xf32>, vector<8x8xf32> -> vector<8x8xf32>
    %c8_92 = arith.constant 8 : index
    %c0_93 = arith.constant 0 : index
    %168 = vector.load %arg14[%c8_92, %c0_93] : memref<32x8xf32, #tpu.memory_space<vmem>>, vector<8x8xf32>
    tpu.vector_store %arg14[%c8_92, %c0_93], %167 {strides = array<i32>} : memref<32x8xf32, #tpu.memory_space<vmem>>, vector<8x8xf32>,
    %169 = vector.extract_strided_slice %136 {offsets = [0, 16], sizes = [8, 8], strides = [1, 1]} : vector<8x32xf32> to vector<8x8xf32>
    %170 = vector.extract_strided_slice %125 {offsets = [16, 0], sizes = [8, 16], strides = [1, 1]} : vector<32x16xf32> to vector<8x16xf32>
    %171 = vector.extract_strided_slice %126 {offsets = [16, 0], sizes = [8, 16], strides = [1, 1]} : vector<32x16xf32> to vector<8x16xf32>
    %cst_94 = arith.constant dense<0.000000e+00> : vector<8x16xf32>
    %172 = tpu.matmul %169, %170, %cst_94 {dimension_numbers = #tpu.dot_dimension_numbers<[1], [0], [0], [1], [0, 0, 1, 1], [], []>} : vector<8x8xf32>, vector<8x16xf32>, vector<8x16xf32> -> vector<8x16xf32>
    %cst_95 = arith.constant dense<0xFF800000> : vector<8xf32>
    %173 = vector.multi_reduction <maximumf>, %172, %cst_95 [1] : vector<8x16xf32> to vector<8xf32>
    %174 = vector.shape_cast %173 : vector<8xf32> to vector<8x1xf32>
    %175 = vector.broadcast %174 : vector<8x1xf32> to vector<8x16xf32>
    %176 = arith.subf %172, %175 : vector<8x16xf32>
    %177 = math.exp %176 : vector<8x16xf32>
    %cst_96 = arith.constant dense<0.000000e+00> : vector<8xf32>
    %178 = vector.multi_reduction <add>, %177, %cst_96 [1] : vector<8x16xf32> to vector<8xf32>
    %179 = vector.shape_cast %178 : vector<8xf32> to vector<8x1xf32>
    %180 = tpu.reciprocal %179 {approx = true} : vector<8x1xf32> -> vector<8x1xf32>
    %181 = vector.broadcast %180 : vector<8x1xf32> to vector<8x16xf32>
    %182 = arith.mulf %177, %181 : vector<8x16xf32>
    %cst_97 = arith.constant dense<0.000000e+00> : vector<8x8xf32>
    %183 = tpu.matmul %171, %182, %cst_97 {dimension_numbers = #tpu.dot_dimension_numbers<[1], [1], [0], [0], [0, 0, 1, 0], [], []>} : vector<8x16xf32>, vector<8x16xf32>, vector<8x8xf32> -> vector<8x8xf32>
    %c16_98 = arith.constant 16 : index
    %c0_99 = arith.constant 0 : index
    %184 = vector.load %arg14[%c16_98, %c0_99] : memref<32x8xf32, #tpu.memory_space<vmem>>, vector<8x8xf32>
    tpu.vector_store %arg14[%c16_98, %c0_99], %183 {strides = array<i32>} : memref<32x8xf32, #tpu.memory_space<vmem>>, vector<8x8xf32>,
    %185 = vector.extract_strided_slice %136 {offsets = [0, 24], sizes = [8, 8], strides = [1, 1]} : vector<8x32xf32> to vector<8x8xf32>
    %186 = vector.extract_strided_slice %125 {offsets = [24, 0], sizes = [8, 16], strides = [1, 1]} : vector<32x16xf32> to vector<8x16xf32>
    %187 = vector.extract_strided_slice %126 {offsets = [24, 0], sizes = [8, 16], strides = [1, 1]} : vector<32x16xf32> to vector<8x16xf32>
    %cst_100 = arith.constant dense<0.000000e+00> : vector<8x16xf32>
    %188 = tpu.matmul %185, %186, %cst_100 {dimension_numbers = #tpu.dot_dimension_numbers<[1], [0], [0], [1], [0, 0, 1, 1], [], []>} : vector<8x8xf32>, vector<8x16xf32>, vector<8x16xf32> -> vector<8x16xf32>
    %cst_101 = arith.constant dense<0xFF800000> : vector<8xf32>
    %189 = vector.multi_reduction <maximumf>, %188, %cst_101 [1] : vector<8x16xf32> to vector<8xf32>
    %190 = vector.shape_cast %189 : vector<8xf32> to vector<8x1xf32>
    %191 = vector.broadcast %190 : vector<8x1xf32> to vector<8x16xf32>
    %192 = arith.subf %188, %191 : vector<8x16xf32>
    %193 = math.exp %192 : vector<8x16xf32>
    %cst_102 = arith.constant dense<0.000000e+00> : vector<8xf32>
    %194 = vector.multi_reduction <add>, %193, %cst_102 [1] : vector<8x16xf32> to vector<8xf32>
    %195 = vector.shape_cast %194 : vector<8xf32> to vector<8x1xf32>
    %196 = tpu.reciprocal %195 {approx = true} : vector<8x1xf32> -> vector<8x1xf32>
    %197 = vector.broadcast %196 : vector<8x1xf32> to vector<8x16xf32>
    %198 = arith.mulf %193, %197 : vector<8x16xf32>
    %cst_103 = arith.constant dense<0.000000e+00> : vector<8x8xf32>
    %199 = tpu.matmul %187, %198, %cst_103 {dimension_numbers = #tpu.dot_dimension_numbers<[1], [1], [0], [0], [0, 0, 1, 0], [], []>} : vector<8x16xf32>, vector<8x16xf32>, vector<8x8xf32> -> vector<8x8xf32>
    %c24_104 = arith.constant 24 : index
    %c0_105 = arith.constant 0 : index
    %200 = vector.load %arg14[%c24_104, %c0_105] : memref<32x8xf32, #tpu.memory_space<vmem>>, vector<8x8xf32>
    tpu.vector_store %arg14[%c24_104, %c0_105], %199 {strides = array<i32>} : memref<32x8xf32, #tpu.memory_space<vmem>>, vector<8x8xf32>,
    %c0_106 = arith.constant 0 : index
    %c0_107 = arith.constant 0 : index
    %201 = vector.load %arg14[%c0_106, %c0_107] : memref<32x8xf32, #tpu.memory_space<vmem>>, vector<32x8xf32>
    %cst_108 = arith.constant dense<0.000000e+00> : vector<32x8xf32>
    %202 = tpu.matmul %12, %201, %cst_108 {dimension_numbers = #tpu.dot_dimension_numbers<[1], [0], [0], [1], [0, 0, 1, 1], [], []>} : vector<32x32xf32>, vector<32x8xf32>, vector<32x8xf32> -> vector<32x8xf32>
    %203 = vector.broadcast %13 : vector<32x1xf32> to vector<32x8xf32>
    %204 = arith.addf %202, %203 : vector<32x8xf32>
    %c1_109 = arith.constant 1 : index
    %c0_110 = arith.constant 0 : index
    %c0_111 = arith.constant 0 : index
    %205 = vector.load %arg12[%c1_109, %c0_110, %c0_111] : memref<2x32x8xf32, #tpu.memory_space<vmem>>, vector<1x32x8xf32>
    %206 = vector.shape_cast %205 : vector<1x32x8xf32> to vector<32x8xf32>
    %207 = vector.shape_cast %204 : vector<32x8xf32> to vector<1x32x8xf32>
    tpu.vector_store %arg12[%c1_109, %c0_110, %c0_111], %207 {strides = array<i32>} : memref<2x32x8xf32, #tpu.memory_space<vmem>>, vector<1x32x8xf32>,
    return
  }
  func.func @transform_0(%arg0: i32) -> (i32, i32, i32) {
    %c0_i32 = arith.constant 0 : i32
    %c0_i32_0 = arith.constant 0 : i32
    %c0_i32_1 = arith.constant 0 : i32
    %c0_i32_2 = arith.constant 0 : i32
    return %c0_i32, %c0_i32_0, %c0_i32_1 : i32, i32, i32
  }
  func.func @transform_1(%arg0: i32) -> (i32, i32, i32) {
    %c0_i32 = arith.constant 0 : i32
    %c0_i32_0 = arith.constant 0 : i32
    %c0_i32_1 = arith.constant 0 : i32
    %c0_i32_2 = arith.constant 0 : i32
    return %c0_i32, %c0_i32_0, %c0_i32_1 : i32, i32, i32
  }
  func.func @transform_2(%arg0: i32) -> (i32, i32, i32) {
    %c0_i32 = arith.constant 0 : i32
    %c0_i32_0 = arith.constant 0 : i32
    %c0_i32_1 = arith.constant 0 : i32
    %c0_i32_2 = arith.constant 0 : i32
    return %c0_i32, %c0_i32_0, %c0_i32_1 : i32, i32, i32
  }
  func.func @transform_3(%arg0: i32) -> (i32, i32) {
    %c0_i32 = arith.constant 0 : i32
    %c0_i32_0 = arith.constant 0 : i32
    %c0_i32_1 = arith.constant 0 : i32
    return %c0_i32, %c0_i32_0 : i32, i32
  }
  func.func @transform_4(%arg0: i32) -> (i32, i32) {
    %c0_i32 = arith.constant 0 : i32
    %c0_i32_0 = arith.constant 0 : i32
    %c0_i32_1 = arith.constant 0 : i32
    return %c0_i32, %c0_i32_0 : i32, i32
  }
  func.func @transform_5(%arg0: i32) -> (i32, i32) {
    %c0_i32 = arith.constant 0 : i32
    %c0_i32_0 = arith.constant 0 : i32
    %c0_i32_1 = arith.constant 0 : i32
    return %c0_i32, %c0_i32_0 : i32, i32
  }
  func.func @transform_6(%arg0: i32) -> (i32, i32) {
    %c0_i32 = arith.constant 0 : i32
    %c0_i32_0 = arith.constant 0 : i32
    %c0_i32_1 = arith.constant 0 : i32
    return %c0_i32, %c0_i32_0 : i32, i32
  }
  func.func @transform_7(%arg0: i32) -> (i32, i32, i32) {
    %c0_i32 = arith.constant 0 : i32
    %c0_i32_0 = arith.constant 0 : i32
    %c0_i32_1 = arith.constant 0 : i32
    %c0_i32_2 = arith.constant 0 : i32
    return %c0_i32, %c0_i32_0, %c0_i32_1 : i32, i32, i32
  }
  func.func @transform_8(%arg0: i32) -> (i32, i32, i32) {
    %c0_i32 = arith.constant 0 : i32
    %c0_i32_0 = arith.constant 0 : i32
    %c0_i32_1 = arith.constant 0 : i32
    %c0_i32_2 = arith.constant 0 : i32
    return %c0_i32, %c0_i32_0, %c0_i32_1 : i32, i32, i32
  }
  func.func @transform_9(%arg0: i32) -> (i32, i32) {
    %c0_i32 = arith.constant 0 : i32
    %c0_i32_0 = arith.constant 0 : i32
    %c0_i32_1 = arith.constant 0 : i32
    return %c0_i32, %c0_i32_0 : i32, i32
  }
  func.func @transform_10(%arg0: i32) -> (i32, i32) {
    %c0_i32 = arith.constant 0 : i32
    %c0_i32_0 = arith.constant 0 : i32
    %c0_i32_1 = arith.constant 0 : i32
    return %c0_i32, %c0_i32_0 : i32, i32
  }
  func.func @transform_11(%arg0: i32) -> (i32, i32, i32) {
    %c0_i32 = arith.constant 0 : i32
    %c0_i32_0 = arith.constant 0 : i32
    %c0_i32_1 = arith.constant 0 : i32
    %c0_i32_2 = arith.constant 0 : i32
    return %c0_i32, %c0_i32_0, %c0_i32_1 : i32, i32, i32
  }
}

</mosaic_0001>

<llo_original>
// kernel: forward.1
$region0: #{forward.1}
  #allocation0 [shape = 'u32[]', space=smem, size = 0x4, offset = 0x4, fixed_abs, tag = 'smem constant byte address 0x4 - core index']
  #allocation1 [shape = 'u32[144,128]{1,0:T(1,128)}', space=vmem, size = 0x12000, scoped, tag = 'internal scratch']
  #allocation2 [shape = 'f32[32,16]{1,0:T(8,128)}', space=vmem, size = 0x4000, scoped, tag = 'scratch operand']
  #allocation3 [shape = 'f32[32,8]{1,0:T(8,128)}', space=vmem, size = 0x4000, scoped, tag = 'scratch operand']
  %s0 = inlined_call_operand.vmem [shape: f32[2,32,8], index: 0, kind: input, shape index: {}]
  %s1 = inlined_call_operand.vmem [shape: f32[2,32,8], index: 1, kind: input, shape index: {}]
  %s2 = inlined_call_operand.hbm [shape: f32[2,8,32], index: 2, kind: input, shape index: {}]
  %s3 = inlined_call_operand.hbm [shape: f32[96,32], index: 3, kind: input, shape index: {}]
  %s4 = inlined_call_operand.vmem [shape: f32[96,1], index: 4, kind: input, shape index: {}]
  %s5 = inlined_call_operand.hbm [shape: f32[32,64], index: 5, kind: input, shape index: {}]
  %s6 = inlined_call_operand.vmem [shape: f32[1,64], index: 6, kind: input, shape index: {}]
  %s7 = inlined_call_operand.hbm [shape: f32[2,8,32], index: 7, kind: input, shape index: {}]
  %s8 = inlined_call_operand.vmem [shape: f32[2,32,16], index: 8, kind: input, shape index: {}]
  %s9 = inlined_call_operand.hbm [shape: f32[32,32], index: 9, kind: input, shape index: {}]
  %s10 = inlined_call_operand.hbm [shape: f32[32,1], index: 10, kind: input, shape index: {}]
  %s11 = inlined_call_operand.vmem [shape: f32[2,32,8], index: 11, kind: output, shape index: {}]
  %s12 = sld [smem:[#allocation0]]
  $region78: #{forward.1} parent=0
    _
  %s14 = ssub.s32 1, %s12
  %s15 = scalar_select 0, %s14, %s12
  $region1: #{forward.1} parent=0
    #allocation4 [shape = 'u8[8192]{0}', space=vmem, size = 0x2000, scoped, tag = 'input window, operand 2, single buffered']
    #allocation5 [shape = 's32[1]{0}', space=sflag, size = 0x4, scoped, tag = 'scoped memory for forward.1']
    #allocation6 [shape = 'u8[49152]{0}', space=vmem, size = 0xc000, scoped, tag = 'input window, operand 3, single buffered']
    #allocation7 [shape = 's32[1]{0}', space=sflag, size = 0x4, scoped, tag = 'scoped memory for forward.1']
    #allocation8 [shape = 'u8[16384]{0}', space=vmem, size = 0x4000, scoped, tag = 'input window, operand 5, single buffered']
    #allocation9 [shape = 'u8[8192]{0}', space=vmem, size = 0x2000, scoped, tag = 'input window, operand 7, single buffered']
    #allocation10 [shape = 's32[1]{0}', space=sflag, size = 0x4, scoped, tag = 'scoped memory for forward.1']
    #allocation11 [shape = 'u8[16384]{0}', space=vmem, size = 0x4000, scoped, tag = 'input window, operand 9, single buffered']
    #allocation12 [shape = 'u8[16384]{0}', space=vmem, size = 0x4000, scoped, tag = 'input window, operand 10, single buffered']
    #allocation13 [shape = 's32[1]{0}', space=sflag, size = 0x4, scoped, tag = 'scoped memory for forward.1']
    %16 = vsyncpa [#allocation5], 0
    %17 = vsyncpa [#allocation7], 0
    %18 = vsyncpa [#allocation10], 0
    %19 = vsyncpa [#allocation13], 0
    // Predicated region
    $region2: #{forward.1} parent=1 // pred_check
      _
    $region3: #{forward.1} parent=1 // pred_check_branch
      %21 = sbr.rel (0) target = $region5
    $region4: #{forward.1} parent=1 // pred_region
      _
    $region5: #{forward.1} parent=1 // pred_fallthru
      _
    // Predicated region
    $region6: #{forward.1} parent=1 // pred_check
      _
    $region7: #{forward.1} parent=1 // pred_check_branch
      %23 = sbr.rel (0) target = $region9
    $region8: #{forward.1} parent=1 // pred_region
      _
    $region9: #{forward.1} parent=1 // pred_fallthru
      _
    // Predicated region
    $region10: #{forward.1} parent=1 // pred_check
      _
    $region11: #{forward.1} parent=1 // pred_check_branch
      %25 = sbr.rel (0) target = $region13
    $region12: #{forward.1} parent=1 // pred_region
      %s27 = ssub.s32 256, 256
      %28 = vsyncadd [#allocation5], %s27
      %s29 = sshll.u32 [#allocation4], 4
      %s30 = int_to_ptr.vmem [resolvable:$true] %s29
      %35 = dma.hbm_to_vmem [thread:$0]  %s2, 256, %s30, [#allocation5], 128, 128, 8
    $region13: #{forward.1} parent=1 // pred_fallthru
      _
    // Predicated region
    $region14: #{forward.1} parent=1 // pred_check
      _
    $region15: #{forward.1} parent=1 // pred_check_branch
      %37 = sbr.rel (0) target = $region17
    $region16: #{forward.1} parent=1 // pred_region
      %s39 = ssub.s32 1536, 1536
      %40 = vsyncadd [#allocation7], %s39
      %s41 = sshll.u32 [#allocation6], 4
      %s42 = int_to_ptr.vmem [resolvable:$true] %s41
      %47 = dma.hbm_to_vmem [thread:$0]  %s3, 1536, %s42, [#allocation7], 128, 128, 8
    $region17: #{forward.1} parent=1 // pred_fallthru
      _
    // Predicated region
    $region18: #{forward.1} parent=1 // pred_check
      _
    $region19: #{forward.1} parent=1 // pred_check_branch
      %49 = sbr.rel (0) target = $region21
    $region20: #{forward.1} parent=1 // pred_region
      _
    $region21: #{forward.1} parent=1 // pred_fallthru
      _
    // Predicated region
    $region22: #{forward.1} parent=1 // pred_check
      _
    $region23: #{forward.1} parent=1 // pred_check_branch
      %51 = sbr.rel (0) target = $region25
    $region24: #{forward.1} parent=1 // pred_region
      %s53 = ssub.s32 512, 512
      %54 = vsyncadd [#allocation7], %s53
      %s55 = sshll.u32 [#allocation8], 4
      %s56 = int_to_ptr.vmem [resolvable:$true] %s55
      %61 = dma.hbm_to_vmem [thread:$0]  %s5, 512, %s56, [#allocation7], 128, 128, 8
    $region25: #{forward.1} parent=1 // pred_fallthru
      _
    // Predicated region
    $region26: #{forward.1} parent=1 // pred_check
      _
    $region27: #{forward.1} parent=1 // pred_check_branch
      %63 = sbr.rel (0) target = $region29
    $region28: #{forward.1} parent=1 // pred_region
      _
    $region29: #{forward.1} parent=1 // pred_fallthru
      _
    // Predicated region
    $region30: #{forward.1} parent=1 // pred_check
      _
    $region31: #{forward.1} parent=1 // pred_check_branch
      %65 = sbr.rel (0) target = $region33
    $region32: #{forward.1} parent=1 // pred_region
      %s67 = ssub.s32 256, 256
      %68 = vsyncadd [#allocation10], %s67
      %s69 = sshll.u32 [#allocation9], 4
      %s70 = int_to_ptr.vmem [resolvable:$true] %s69
      %75 = dma.hbm_to_vmem [thread:$0]  %s7, 256, %s70, [#allocation10], 128, 128, 8
    $region33: #{forward.1} parent=1 // pred_fallthru
      _
    // Predicated region
    $region34: #{forward.1} parent=1 // pred_check
      _
    $region35: #{forward.1} parent=1 // pred_check_branch
      %77 = sbr.rel (0) target = $region37
    $region36: #{forward.1} parent=1 // pred_region
      _
    $region37: #{forward.1} parent=1 // pred_fallthru
      _
    // Predicated region
    $region38: #{forward.1} parent=1 // pred_check
      _
    $region39: #{forward.1} parent=1 // pred_check_branch
      %79 = sbr.rel (0) target = $region41
    $region40: #{forward.1} parent=1 // pred_region
      %s81 = ssub.s32 512, 512
      %82 = vsyncadd [#allocation10], %s81
      %s83 = sshll.u32 [#allocation11], 4
      %s84 = int_to_ptr.vmem [resolvable:$true] %s83
      %89 = dma.hbm_to_vmem [thread:$0]  %s9, 512, %s84, [#allocation10], 128, 128, 8
    $region41: #{forward.1} parent=1 // pred_fallthru
      _
    // Predicated region
    $region42: #{forward.1} parent=1 // pred_check
      _
    $region43: #{forward.1} parent=1 // pred_check_branch
      %91 = sbr.rel (0) target = $region45
    $region44: #{forward.1} parent=1 // pred_region
      %s93 = ssub.s32 512, 512
      %94 = vsyncadd [#allocation13], %s93
      %s95 = sshll.u32 [#allocation12], 4
      %s96 = int_to_ptr.vmem [resolvable:$true] %s95
      %101 = dma.hbm_to_vmem [thread:$0]  %s10, 512, %s96, [#allocation13], 128, 128, 8
    $region45: #{forward.1} parent=1 // pred_fallthru
      _
    // Predicated region
    $region46: #{forward.1} parent=1 // pred_check
      _
    $region47: #{forward.1} parent=1 // pred_check_branch
      %103 = sbr.rel (0) target = $region49
    $region48: #{forward.1} parent=1 // pred_region
      %104 = dma.done [#allocation5], 256
    $region49: #{forward.1} parent=1 // pred_fallthru
      _
    // Predicated region
    $region50: #{forward.1} parent=1 // pred_check
      _
    $region51: #{forward.1} parent=1 // pred_check_branch
      %106 = sbr.rel (0) target = $region53
    $region52: #{forward.1} parent=1 // pred_region
      %107 = dma.done [#allocation7], 1536
    $region53: #{forward.1} parent=1 // pred_fallthru
      _
    // Predicated region
    $region54: #{forward.1} parent=1 // pred_check
      _
    $region55: #{forward.1} parent=1 // pred_check_branch
      %109 = sbr.rel (0) target = $region57
    $region56: #{forward.1} parent=1 // pred_region
      %110 = dma.done [#allocation7], 512
    $region57: #{forward.1} parent=1 // pred_fallthru
      _
    // Predicated region
    $region58: #{forward.1} parent=1 // pred_check
      _
    $region59: #{forward.1} parent=1 // pred_check_branch
      %112 = sbr.rel (0) target = $region61
    $region60: #{forward.1} parent=1 // pred_region
      %113 = dma.done [#allocation10], 256
    $region61: #{forward.1} parent=1 // pred_fallthru
      _
    // Predicated region
    $region62: #{forward.1} parent=1 // pred_check
      _
    $region63: #{forward.1} parent=1 // pred_check_branch
      %115 = sbr.rel (0) target = $region65
    $region64: #{forward.1} parent=1 // pred_region
      %116 = dma.done [#allocation10], 512
    $region65: #{forward.1} parent=1 // pred_fallthru
      _
    // Predicated region
    $region66: #{forward.1} parent=1 // pred_check
      _
    $region67: #{forward.1} parent=1 // pred_check_branch
      %118 = sbr.rel (0) target = $region69
    $region68: #{forward.1} parent=1 // pred_region
      %119 = dma.done [#allocation13], 512
    $region69: #{forward.1} parent=1 // pred_fallthru
      _
    %v120 = vld [vmem:[#allocation6] sm:$0xff]
    %v121 = vld [vmem:[#allocation6 + $0x8] sm:$0xff]
    %v122 = vld [vmem:[#allocation6 + $0x10] sm:$0xff]
    %v123 = vld [vmem:[#allocation6 + $0x18] sm:$0xff]
    %v124 = vld [vmem:[#allocation6 + $0x20] sm:$0xff]
    %v125 = vld [vmem:[#allocation6 + $0x28] sm:$0xff]
    %v126 = vld [vmem:[#allocation6 + $0x30] sm:$0xff]
    %v127 = vld [vmem:[#allocation6 + $0x38] sm:$0xff]
    %v128 = vld [vmem:[#allocation6 + $0x40] sm:$0xff]
    %v129 = vld [vmem:[#allocation6 + $0x48] sm:$0xff]
    %v130 = vld [vmem:[#allocation6 + $0x50] sm:$0xff]
    %v131 = vld [vmem:[#allocation6 + $0x58] sm:$0xff]
    %v132 = vld [vmem:[%s4] sm:$0xff]
    %v133 = vld [vmem:[%s4 + $0x8] sm:$0xff]
    %v134 = vld [vmem:[%s4 + $0x10] sm:$0xff]
    %v135 = vld [vmem:[%s4 + $0x18] sm:$0xff]
    %v136 = vld [vmem:[%s4 + $0x20] sm:$0xff]
    %v137 = vld [vmem:[%s4 + $0x28] sm:$0xff]
    %v138 = vld [vmem:[%s4 + $0x30] sm:$0xff]
    %v139 = vld [vmem:[%s4 + $0x38] sm:$0xff]
    %v140 = vld [vmem:[%s4 + $0x40] sm:$0xff]
    %v141 = vld [vmem:[%s4 + $0x48] sm:$0xff]
    %v142 = vld [vmem:[%s4 + $0x50] sm:$0xff]
    %v143 = vld [vmem:[%s4 + $0x58] sm:$0xff]
    %v144 = vld [vmem:[#allocation8] sm:$0xff]
    %v145 = vld [vmem:[#allocation8 + $0x8] sm:$0xff]
    %v146 = vld [vmem:[#allocation8 + $0x10] sm:$0xff]
    %v147 = vld [vmem:[#allocation8 + $0x18] sm:$0xff]
    %v148 = vld [vmem:[%s6] sm:$0x1]
    %v149 = vld [vmem:[#allocation9] sm:$0xff]
    %s150 = scalar_lea.vmem [#allocation9], 8
    %v151 = vld [vmem:[%s150] sm:$0xff]
    %v152 = vld [vmem:[%s8] sm:$0xff]
    %v153 = vld [vmem:[%s8 + $0x8] sm:$0xff]
    %v154 = vld [vmem:[%s8 + $0x10] sm:$0xff]
    %v155 = vld [vmem:[%s8 + $0x18] sm:$0xff]
    %s156 = scalar_lea.vmem %s8, 32
    %v157 = vld [vmem:[%s156] sm:$0xff]
    %v158 = vld [vmem:[%s156 + $0x8] sm:$0xff]
    %v159 = vld [vmem:[%s156 + $0x10] sm:$0xff]
    %v160 = vld [vmem:[%s156 + $0x18] sm:$0xff]
    %v161 = vld [vmem:[#allocation11] sm:$0xff]
    %v162 = vld [vmem:[#allocation11 + $0x8] sm:$0xff]
    %v163 = vld [vmem:[#allocation11 + $0x10] sm:$0xff]
    %v164 = vld [vmem:[#allocation11 + $0x18] sm:$0xff]
    %v165 = vld [vmem:[#allocation12] sm:$0xff]
    %v166 = vld [vmem:[#allocation12 + $0x8] sm:$0xff]
    %v167 = vld [vmem:[#allocation12 + $0x10] sm:$0xff]
    %v168 = vld [vmem:[#allocation12 + $0x18] sm:$0xff]
    %v169 = vld [vmem:[%s0] sm:$0xff]
    %v170 = vld [vmem:[%s0 + $0x8] sm:$0xff]
    %v171 = vld [vmem:[%s0 + $0x10] sm:$0xff]
    %v172 = vld [vmem:[%s0 + $0x18] sm:$0xff]
    %vm173 = vcmask 64512
    %174 = vst.msk [vmem:[#allocation2] sm:$0xff] %vm173, %v169
    %175 = vst.msk [vmem:[#allocation2 + $0x8] sm:$0xff] %vm173, %v170
    %176 = vst.msk [vmem:[#allocation2 + $0x10] sm:$0xff] %vm173, %v171
    %177 = vst.msk [vmem:[#allocation2 + $0x18] sm:$0xff] %vm173, %v172
    %v178 = vld [vmem:[%s1] sm:$0xff]
    %v179 = vld [vmem:[%s1 + $0x8] sm:$0xff]
    %v180 = vld [vmem:[%s1 + $0x10] sm:$0xff]
    %v181 = vld [vmem:[%s1 + $0x18] sm:$0xff]
    %186 = vrot.lane.b32.xlu0 %v178, 8
    %v187 = vpop.permute.xlu0 %186
    %188 = vrot.lane.b32.xlu0 %v179, 8
    %v189 = vpop.permute.xlu0 %188
    %190 = vrot.lane.b32.xlu0 %v180, 8
    %v191 = vpop.permute.xlu0 %190
    %192 = vrot.lane.b32.xlu0 %v181, 8
    %v193 = vpop.permute.xlu0 %192
    %vm198 = vcmask 130112
    %199 = vst.msk [vmem:[#allocation2] sm:$0xff] %vm198, %v187
    %200 = vst.msk [vmem:[#allocation2 + $0x8] sm:$0xff] %vm198, %v189
    %201 = vst.msk [vmem:[#allocation2 + $0x10] sm:$0xff] %vm198, %v191
    %202 = vst.msk [vmem:[#allocation2 + $0x18] sm:$0xff] %vm198, %v193
    %v203 = vld [vmem:[#allocation2] sm:$0xff]
    %v204 = vld [vmem:[#allocation2 + $0x8] sm:$0xff]
    %v205 = vld [vmem:[#allocation2 + $0x10] sm:$0xff]
    %v206 = vld [vmem:[#allocation2 + $0x18] sm:$0xff]
    %208 = vset.pattern.permute.xlu0 0
    %209 = vperm.xlu0 %208, %v132
    %v210 = vpop.permute.xlu0 %209
    %213 = vset.pattern.permute.xlu0 0
    %214 = vperm.xlu0 %213, %v133
    %v215 = vpop.permute.xlu0 %214
    %218 = vset.pattern.permute.xlu0 0
    %219 = vperm.xlu0 %218, %v134
    %v220 = vpop.permute.xlu0 %219
    %223 = vset.pattern.permute.xlu0 0
    %224 = vperm.xlu0 %223, %v135
    %v225 = vpop.permute.xlu0 %224
    %228 = vset.pattern.permute.xlu0 0
    %229 = vperm.xlu0 %228, %v136
    %v230 = vpop.permute.xlu0 %229
    %233 = vset.pattern.permute.xlu0 0
    %234 = vperm.xlu0 %233, %v137
    %v235 = vpop.permute.xlu0 %234
    %238 = vset.pattern.permute.xlu0 0
    %239 = vperm.xlu0 %238, %v138
    %v240 = vpop.permute.xlu0 %239
    %243 = vset.pattern.permute.xlu0 0
    %244 = vperm.xlu0 %243, %v139
    %v245 = vpop.permute.xlu0 %244
    %248 = vset.pattern.permute.xlu0 0
    %249 = vperm.xlu0 %248, %v140
    %v250 = vpop.permute.xlu0 %249
    %253 = vset.pattern.permute.xlu0 0
    %254 = vperm.xlu0 %253, %v141
    %v255 = vpop.permute.xlu0 %254
    %258 = vset.pattern.permute.xlu0 0
    %259 = vperm.xlu0 %258, %v142
    %v260 = vpop.permute.xlu0 %259
    %263 = vset.pattern.permute.xlu0 0
    %264 = vperm.xlu0 %263, %v143
    %v265 = vpop.permute.xlu0 %264
    %vm267 = vcmask 261120
    %v269 = vsel %vm267, %v120, 0
    %v272 = vsel %vm267, %v121, 0
    %v275 = vsel %vm267, %v122, 0
    %v278 = vsel %vm267, %v123, 0
    %v281 = vsel %vm267, %v124, 0
    %v284 = vsel %vm267, %v125, 0
    %v287 = vsel %vm267, %v126, 0
    %v290 = vsel %vm267, %v127, 0
    %v293 = vsel %vm267, %v128, 0
    %v296 = vsel %vm267, %v129, 0
    %v299 = vsel %vm267, %v130, 0
    %v302 = vsel %vm267, %v131, 0
    %304 = vmatprep.subr.mxu0 0.0
    %305 = vmatpush1.msra.mxu0 0.0
    %306 = vmatprep.subr.mxu0 0.0
    %307 = vmatpush1.msra.mxu0 0.0
    %308 = vmatprep.subr.mxu0 0.0
    %309 = vmatpush1.msra.mxu0 0.0
    %310 = vmatprep.subr.mxu0 0.0
    %311 = vmatpush1.msra.mxu0 0.0
    %312 = vmatprep.subr.mxu0 0.0
    %313 = vmatpush1.msra.mxu0 0.0
    %314 = vmatprep.subr.mxu0 0.0
    %315 = vmatpush1.msra.mxu0 0.0
    %316 = vmatprep.subr.mxu0 0.0
    %317 = vmatpush1.msra.mxu0 0.0
    %318 = vmatprep.subr.mxu0 0.0
    %319 = vmatpush1.msra.mxu0 0.0
    %320 = vmatprep.subr.mxu0 0.0
    %321 = vmatpush1.msra.mxu0 0.0
    %322 = vmatprep.subr.mxu0 0.0
    %323 = vmatpush1.msra.mxu0 0.0
    %324 = vmatprep.subr.mxu0 0.0
    %325 = vmatpush1.msra.mxu0 0.0
    %326 = vmatprep.subr.mxu0 0.0
    %327 = vmatpush1.msra.mxu0 0.0
    %328 = vmatprep.subr.mxu0 0.0
    %329 = vmatpush1.msra.mxu0 %v206
    %330 = vmatprep.subr.mxu0 0.0
    %331 = vmatpush1.msra.mxu0 %v205
    %332 = vmatprep.subr.mxu0 0.0
    %333 = vmatpush1.msra.mxu0 %v204
    %334 = vmatprep.subr.mxu0 0.0
    %335 = vmatpush1.msra.mxu0 %v203
    %336 = vmatprep.subr.mxu0 0.0
    %337 = vmatpush2.msra.mxu0 0.0
    %338 = vmatprep.subr.mxu0 0.0
    %339 = vmatpush2.msra.mxu0 0.0
    %340 = vmatprep.subr.mxu0 0.0
    %341 = vmatpush2.msra.mxu0 0.0
    %342 = vmatprep.subr.mxu0 0.0
    %343 = vmatpush2.msra.mxu0 0.0
    %344 = vmatprep.subr.mxu0 0.0
    %345 = vmatpush2.msra.mxu0 0.0
    %346 = vmatprep.subr.mxu0 0.0
    %347 = vmatpush2.msra.mxu0 0.0
    %348 = vmatprep.subr.mxu0 0.0
    %349 = vmatpush2.msra.mxu0 0.0
    %350 = vmatprep.subr.mxu0 0.0
    %351 = vmatpush2.msra.mxu0 0.0
    %352 = vmatprep.subr.mxu0 0.0
    %353 = vmatpush2.msra.mxu0 0.0
    %354 = vmatprep.subr.mxu0 0.0
    %355 = vmatpush2.msra.mxu0 0.0
    %356 = vmatprep.subr.mxu0 0.0
    %357 = vmatpush2.msra.mxu0 0.0
    %358 = vmatprep.subr.mxu0 0.0
    %359 = vmatpush2.msra.mxu0 0.0
    %360 = vmatprep.subr.mxu0 0.0
    %361 = vmatpush2.msra.mxu0 0.0
    %362 = vmatprep.subr.mxu0 0.0
    %363 = vmatpush2.msra.mxu0 0.0
    %364 = vmatprep.subr.mxu0 0.0
    %365 = vmatpush2.msra.mxu0 0.0
    %366 = vmatprep.subr.mxu0 0.0
    %367 = vmatpush2.msra.mxu0 0.0
    %368 = vmatprep.mubr.f32.mxu0 0.0
    %369 = vmatmul.mubr.f32.gmra.mxu0 %v269
    %v370 = vpop.f32.mrf.mxu0
    %v371 = vadd.f32 %v210, %v370
    %v372 = vpop.f32.mrf.mxu0
    %373 = vmatprep.mubr.f32.mxu0 0.0
    %374 = vmatmul.mubr.f32.gmra.mxu0 %v272
    %v375 = vpop.f32.mrf.mxu0
    %v376 = vadd.f32 %v215, %v375
    %v377 = vpop.f32.mrf.mxu0
    %378 = vmatprep.mubr.f32.mxu0 0.0
    %379 = vmatmul.mubr.f32.gmra.mxu0 %v275
    %v380 = vpop.f32.mrf.mxu0
    %v381 = vadd.f32 %v220, %v380
    %v382 = vpop.f32.mrf.mxu0
    %383 = vmatprep.mubr.f32.mxu0 0.0
    %384 = vmatmul.mubr.f32.gmra.mxu0 %v278
    %v385 = vpop.f32.mrf.mxu0
    %v386 = vadd.f32 %v225, %v385
    %v387 = vpop.f32.mrf.mxu0
    %388 = vmatprep.mubr.f32.mxu0 0.0
    %389 = vmatmul.mubr.f32.gmra.mxu0 %v281
    %v390 = vpop.f32.mrf.mxu0
    %v391 = vadd.f32 %v230, %v390
    %v392 = vpop.f32.mrf.mxu0
    %393 = vmatprep.mubr.f32.mxu0 0.0
    %394 = vmatmul.mubr.f32.gmra.mxu0 %v284
    %v395 = vpop.f32.mrf.mxu0
    %v396 = vadd.f32 %v235, %v395
    %v397 = vpop.f32.mrf.mxu0
    %398 = vmatprep.mubr.f32.mxu0 0.0
    %399 = vmatmul.mubr.f32.gmra.mxu0 %v287
    %v400 = vpop.f32.mrf.mxu0
    %v401 = vadd.f32 %v240, %v400
    %v402 = vpop.f32.mrf.mxu0
    %403 = vmatprep.mubr.f32.mxu0 0.0
    %404 = vmatmul.mubr.f32.gmra.mxu0 %v290
    %v405 = vpop.f32.mrf.mxu0
    %v406 = vadd.f32 %v245, %v405
    %v407 = vpop.f32.mrf.mxu0
    %408 = vmatprep.mubr.f32.mxu0 0.0
    %409 = vmatmul.mubr.f32.gmra.mxu0 %v293
    %v410 = vpop.f32.mrf.mxu0
    %v411 = vadd.f32 %v250, %v410
    %v412 = vpop.f32.mrf.mxu0
    %413 = vmatprep.mubr.f32.mxu0 0.0
    %414 = vmatmul.mubr.f32.gmra.mxu0 %v296
    %v415 = vpop.f32.mrf.mxu0
    %v416 = vadd.f32 %v255, %v415
    %v417 = vpop.f32.mrf.mxu0
    %418 = vmatprep.mubr.f32.mxu0 0.0
    %419 = vmatmul.mubr.f32.gmra.mxu0 %v299
    %v420 = vpop.f32.mrf.mxu0
    %v421 = vadd.f32 %v260, %v420
    %v422 = vpop.f32.mrf.mxu0
    %423 = vmatprep.mubr.f32.mxu0 0.0
    %424 = vmatmul.mubr.f32.gmra.mxu0 %v302
    %v425 = vpop.f32.mrf.mxu0
    %v426 = vadd.f32 %v265, %v425
    %v427 = vpop.f32.mrf.mxu0
    %428 = vdwg.mxu0
    %v429 = vmul.f32 %v371, %v152
    %v430 = vmul.f32 %v376, %v153
    %v431 = vmul.f32 %v381, %v154
    %v432 = vmul.f32 %v386, %v155
    %v433 = vmul.f32 %v391, %v157
    %v434 = vmul.f32 %v396, %v158
    %v435 = vmul.f32 %v401, %v159
    %v436 = vmul.f32 %v406, %v160
    %v437 = vadd.f32 %v429, %v433
    %v438 = vadd.f32 %v430, %v434
    %v439 = vadd.f32 %v431, %v435
    %v440 = vadd.f32 %v432, %v436
    %v441 = vld [vmem:[#allocation4] sm:$0xff]
    %v443 = vlaneseq
    %v444 = vshrl.u32 %v443, 7
    %v445 = vsub.s32 0, %v444
    %v446 = vrot.slane %v148, %v445
    %v449 = vsel %vm267, %v441, 0
    %451 = vmatprep.subr.mxu0 0.0
    %452 = vmatpush1.msra.mxu0 0.0
    %453 = vmatprep.subr.mxu0 0.0
    %454 = vmatpush1.msra.mxu0 0.0
    %455 = vmatprep.subr.mxu0 0.0
    %456 = vmatpush1.msra.mxu0 0.0
    %457 = vmatprep.subr.mxu0 0.0
    %458 = vmatpush1.msra.mxu0 0.0
    %459 = vmatprep.subr.mxu0 0.0
    %460 = vmatpush1.msra.mxu0 0.0
    %461 = vmatprep.subr.mxu0 0.0
    %462 = vmatpush1.msra.mxu0 0.0
    %463 = vmatprep.subr.mxu0 0.0
    %464 = vmatpush1.msra.mxu0 0.0
    %465 = vmatprep.subr.mxu0 0.0
    %466 = vmatpush1.msra.mxu0 0.0
    %467 = vmatprep.subr.mxu0 0.0
    %468 = vmatpush1.msra.mxu0 0.0
    %469 = vmatprep.subr.mxu0 0.0
    %470 = vmatpush1.msra.mxu0 0.0
    %471 = vmatprep.subr.mxu0 0.0
    %472 = vmatpush1.msra.mxu0 0.0
    %473 = vmatprep.subr.mxu0 0.0
    %474 = vmatpush1.msra.mxu0 0.0
    %475 = vmatprep.subr.mxu0 0.0
    %476 = vmatpush1.msra.mxu0 %v147
    %477 = vmatprep.subr.mxu0 0.0
    %478 = vmatpush1.msra.mxu0 %v146
    %479 = vmatprep.subr.mxu0 0.0
    %480 = vmatpush1.msra.mxu0 %v145
    %481 = vmatprep.subr.mxu0 0.0
    %482 = vmatpush1.msra.mxu0 %v144
    %483 = vmatprep.subr.mxu0 0.0
    %484 = vmatpush2.msra.mxu0 0.0
    %485 = vmatprep.subr.mxu0 0.0
    %486 = vmatpush2.msra.mxu0 0.0
    %487 = vmatprep.subr.mxu0 0.0
    %488 = vmatpush2.msra.mxu0 0.0
    %489 = vmatprep.subr.mxu0 0.0
    %490 = vmatpush2.msra.mxu0 0.0
    %491 = vmatprep.subr.mxu0 0.0
    %492 = vmatpush2.msra.mxu0 0.0
    %493 = vmatprep.subr.mxu0 0.0
    %494 = vmatpush2.msra.mxu0 0.0
    %495 = vmatprep.subr.mxu0 0.0
    %496 = vmatpush2.msra.mxu0 0.0
    %497 = vmatprep.subr.mxu0 0.0
    %498 = vmatpush2.msra.mxu0 0.0
    %499 = vmatprep.subr.mxu0 0.0
    %500 = vmatpush2.msra.mxu0 0.0
    %501 = vmatprep.subr.mxu0 0.0
    %502 = vmatpush2.msra.mxu0 0.0
    %503 = vmatprep.subr.mxu0 0.0
    %504 = vmatpush2.msra.mxu0 0.0
    %505 = vmatprep.subr.mxu0 0.0
    %506 = vmatpush2.msra.mxu0 0.0
    %507 = vmatprep.subr.mxu0 0.0
    %508 = vmatpush2.msra.mxu0 0.0
    %509 = vmatprep.subr.mxu0 0.0
    %510 = vmatpush2.msra.mxu0 0.0
    %511 = vmatprep.subr.mxu0 0.0
    %512 = vmatpush2.msra.mxu0 0.0
    %513 = vmatprep.subr.mxu0 0.0
    %514 = vmatpush2.msra.mxu0 0.0
    %515 = vmatprep.mubr.f32.mxu0 0.0
    %516 = vmatmul.mubr.f32.gmra.mxu0 %v449
    %v517 = vpop.f32.mrf.mxu0
    %v518 = vadd.f32 %v446, %v517
    %v519 = vpop.f32.mrf.mxu0
    %520 = vdwg.mxu0
    %v521 = vmul.f32 %v518, %v149
    %523 = vrot.lane.b32.xlu0 %v151, 32
    %v524 = vpop.permute.xlu0 %523
    %v526 = vmul.f32 %v518, %v524
    %528 = vrot.lane.b32.xlu0 %v526, 96
    %v529 = vpop.permute.xlu0 %528
    %v531 = vadd.f32 %v521, %v529
    %v533 = vsel %vm173, %v531, 0
    %535 = vmatprep.subr.mxu0 0.0
    %536 = vmatpush1.msra.mxu0 0.0
    %537 = vmatprep.subr.mxu0 0.0
    %538 = vmatpush1.msra.mxu0 0.0
    %539 = vmatprep.subr.mxu0 0.0
    %540 = vmatpush1.msra.mxu0 0.0
    %541 = vmatprep.subr.mxu0 0.0
    %542 = vmatpush1.msra.mxu0 0.0
    %543 = vmatprep.subr.mxu0 0.0
    %544 = vmatpush1.msra.mxu0 0.0
    %545 = vmatprep.subr.mxu0 0.0
    %546 = vmatpush1.msra.mxu0 0.0
    %547 = vmatprep.subr.mxu0 0.0
    %548 = vmatpush1.msra.mxu0 0.0
    %549 = vmatprep.subr.mxu0 0.0
    %550 = vmatpush1.msra.mxu0 0.0
    %551 = vmatprep.subr.mxu0 0.0
    %552 = vmatpush1.msra.mxu0 0.0
    %553 = vmatprep.subr.mxu0 0.0
    %554 = vmatpush1.msra.mxu0 0.0
    %555 = vmatprep.subr.mxu0 0.0
    %556 = vmatpush1.msra.mxu0 0.0
    %557 = vmatprep.subr.mxu0 0.0
    %558 = vmatpush1.msra.mxu0 0.0
    %559 = vmatprep.subr.mxu0 0.0
    %560 = vmatpush1.msra.mxu0 0.0
    %561 = vmatprep.subr.mxu0 0.0
    %562 = vmatpush1.msra.mxu0 0.0
    %563 = vmatprep.subr.mxu0 0.0
    %564 = vmatpush1.msra.mxu0 0.0
    %565 = vmatprep.subr.mxu0 0.0
    %566 = vmatpush1.msra.mxu0 %v437
    %567 = vmatprep.subr.mxu0 0.0
    %568 = vmatpush2.msra.mxu0 0.0
    %569 = vmatprep.subr.mxu0 0.0
    %570 = vmatpush2.msra.mxu0 0.0
    %571 = vmatprep.subr.mxu0 0.0
    %572 = vmatpush2.msra.mxu0 0.0
    %573 = vmatprep.subr.mxu0 0.0
    %574 = vmatpush2.msra.mxu0 0.0
    %575 = vmatprep.subr.mxu0 0.0
    %576 = vmatpush2.msra.mxu0 0.0
    %577 = vmatprep.subr.mxu0 0.0
    %578 = vmatpush2.msra.mxu0 0.0
    %579 = vmatprep.subr.mxu0 0.0
    %580 = vmatpush2.msra.mxu0 0.0
    %581 = vmatprep.subr.mxu0 0.0
    %582 = vmatpush2.msra.mxu0 0.0
    %583 = vmatprep.subr.mxu0 0.0
    %584 = vmatpush2.msra.mxu0 0.0
    %585 = vmatprep.subr.mxu0 0.0
    %586 = vmatpush2.msra.mxu0 0.0
    %587 = vmatprep.subr.mxu0 0.0
    %588 = vmatpush2.msra.mxu0 0.0
    %589 = vmatprep.subr.mxu0 0.0
    %590 = vmatpush2.msra.mxu0 0.0
    %591 = vmatprep.subr.mxu0 0.0
    %592 = vmatpush2.msra.mxu0 0.0
    %593 = vmatprep.subr.mxu0 0.0
    %594 = vmatpush2.msra.mxu0 0.0
    %595 = vmatprep.subr.mxu0 0.0
    %596 = vmatpush2.msra.mxu0 0.0
    %597 = vmatprep.subr.mxu0 0.0
    %598 = vmatpush2.msra.mxu0 0.0
    %599 = vmatprep.mubr.f32.mxu0 0.0
    %600 = vmatmul.mubr.f32.gmra.mxu0 %v533
    %v601 = vpop.f32.mrf.mxu0
    %v602 = vadd.f32 0.0, %v601
    %v603 = vpop.f32.mrf.mxu0
    %604 = vdwg.mxu0
    %vm605 = vcmask 130048
    %v606 = vsel %vm605, %v602, -inf
    %607 = vmax.xlane.f32.xlu0 %v606
    %v608 = vpop.xlane.xlu0 %607
    %v609 = vsub.f32 %v602, %v608
    %v610 = vmul.f32 %v609, 1.442695
    %v611 = vpow.pop %v610
    %v612 = vsel %vm605, %v611, 0.0
    %613 = vadd.xlane.f32.xlu0 %v612
    %v614 = vpop.xlane.xlu0 %613
    %v615 = vrcp.pop %v614
    %v616 = vmul.f32 %v611, %v615
    %v618 = vsel %vm605, %v411, 0
    %v621 = vsel %vm605, %v616, 0
    %623 = vmatprep.subr.mxu0 0.0
    %624 = vmatpush1.xpose.msra.mxu0 0.0
    %625 = vmatprep.subr.mxu0 0.0
    %626 = vmatpush1.xpose.msra.mxu0 0.0
    %627 = vmatprep.subr.mxu0 0.0
    %628 = vmatpush1.xpose.msra.mxu0 0.0
    %629 = vmatprep.subr.mxu0 0.0
    %630 = vmatpush1.xpose.msra.mxu0 0.0
    %631 = vmatprep.subr.mxu0 0.0
    %632 = vmatpush1.xpose.msra.mxu0 0.0
    %633 = vmatprep.subr.mxu0 0.0
    %634 = vmatpush1.xpose.msra.mxu0 0.0
    %635 = vmatprep.subr.mxu0 0.0
    %636 = vmatpush1.xpose.msra.mxu0 0.0
    %637 = vmatprep.subr.mxu0 0.0
    %638 = vmatpush1.xpose.msra.mxu0 0.0
    %639 = vmatprep.subr.mxu0 0.0
    %640 = vmatpush1.xpose.msra.mxu0 0.0
    %641 = vmatprep.subr.mxu0 0.0
    %642 = vmatpush1.xpose.msra.mxu0 0.0
    %643 = vmatprep.subr.mxu0 0.0
    %644 = vmatpush1.xpose.msra.mxu0 0.0
    %645 = vmatprep.subr.mxu0 0.0
    %646 = vmatpush1.xpose.msra.mxu0 0.0
    %647 = vmatprep.subr.mxu0 0.0
    %648 = vmatpush1.xpose.msra.mxu0 0.0
    %649 = vmatprep.subr.mxu0 0.0
    %650 = vmatpush1.xpose.msra.mxu0 0.0
    %651 = vmatprep.subr.mxu0 0.0
    %652 = vmatpush1.xpose.msra.mxu0 0.0
    %653 = vmatprep.subr.mxu0 0.0
    %654 = vmatpush1.xpose.msra.mxu0 %v621
    %655 = vmatprep.subr.mxu0 0.0
    %656 = vmatpush2.xpose.msra.mxu0 0.0
    %657 = vmatprep.subr.mxu0 0.0
    %658 = vmatpush2.xpose.msra.mxu0 0.0
    %659 = vmatprep.subr.mxu0 0.0
    %660 = vmatpush2.xpose.msra.mxu0 0.0
    %661 = vmatprep.subr.mxu0 0.0
    %662 = vmatpush2.xpose.msra.mxu0 0.0
    %663 = vmatprep.subr.mxu0 0.0
    %664 = vmatpush2.xpose.msra.mxu0 0.0
    %665 = vmatprep.subr.mxu0 0.0
    %666 = vmatpush2.xpose.msra.mxu0 0.0
    %667 = vmatprep.subr.mxu0 0.0
    %668 = vmatpush2.xpose.msra.mxu0 0.0
    %669 = vmatprep.subr.mxu0 0.0
    %670 = vmatpush2.xpose.msra.mxu0 0.0
    %671 = vmatprep.subr.mxu0 0.0
    %672 = vmatpush2.xpose.msra.mxu0 0.0
    %673 = vmatprep.subr.mxu0 0.0
    %674 = vmatpush2.xpose.msra.mxu0 0.0
    %675 = vmatprep.subr.mxu0 0.0
    %676 = vmatpush2.xpose.msra.mxu0 0.0
    %677 = vmatprep.subr.mxu0 0.0
    %678 = vmatpush2.xpose.msra.mxu0 0.0
    %679 = vmatprep.subr.mxu0 0.0
    %680 = vmatpush2.xpose.msra.mxu0 0.0
    %681 = vmatprep.subr.mxu0 0.0
    %682 = vmatpush2.xpose.msra.mxu0 0.0
    %683 = vmatprep.subr.mxu0 0.0
    %684 = vmatpush2.xpose.msra.mxu0 0.0
    %685 = vmatprep.subr.mxu0 0.0
    %686 = vmatpush2.xpose.msra.mxu0 0.0
    %687 = vmatprep.mubr.f32.mxu0 0.0
    %688 = vmatmul.mubr.f32.gmra.mxu0 %v618
    %v689 = vpop.f32.mrf.mxu0
    %v690 = vadd.f32 0.0, %v689
    %v691 = vpop.f32.mrf.mxu0
    %692 = vdwg.mxu0
    %693 = vst.msk [vmem:[#allocation3] sm:$0xff] %vm173, %v690
    %694 = vrot.lane.b32.xlu0 %v531, 120
    %v695 = vpop.permute.xlu0 %694
    %v696 = vsel %vm173, %v695, 0
    %698 = vmatprep.subr.mxu0 0.0
    %699 = vmatpush1.msra.mxu0 0.0
    %700 = vmatprep.subr.mxu0 0.0
    %701 = vmatpush1.msra.mxu0 0.0
    %702 = vmatprep.subr.mxu0 0.0
    %703 = vmatpush1.msra.mxu0 0.0
    %704 = vmatprep.subr.mxu0 0.0
    %705 = vmatpush1.msra.mxu0 0.0
    %706 = vmatprep.subr.mxu0 0.0
    %707 = vmatpush1.msra.mxu0 0.0
    %708 = vmatprep.subr.mxu0 0.0
    %709 = vmatpush1.msra.mxu0 0.0
    %710 = vmatprep.subr.mxu0 0.0
    %711 = vmatpush1.msra.mxu0 0.0
    %712 = vmatprep.subr.mxu0 0.0
    %713 = vmatpush1.msra.mxu0 0.0
    %714 = vmatprep.subr.mxu0 0.0
    %715 = vmatpush1.msra.mxu0 0.0
    %716 = vmatprep.subr.mxu0 0.0
    %717 = vmatpush1.msra.mxu0 0.0
    %718 = vmatprep.subr.mxu0 0.0
    %719 = vmatpush1.msra.mxu0 0.0
    %720 = vmatprep.subr.mxu0 0.0
    %721 = vmatpush1.msra.mxu0 0.0
    %722 = vmatprep.subr.mxu0 0.0
    %723 = vmatpush1.msra.mxu0 0.0
    %724 = vmatprep.subr.mxu0 0.0
    %725 = vmatpush1.msra.mxu0 0.0
    %726 = vmatprep.subr.mxu0 0.0
    %727 = vmatpush1.msra.mxu0 0.0
    %728 = vmatprep.subr.mxu0 0.0
    %729 = vmatpush1.msra.mxu0 %v438
    %730 = vmatprep.subr.mxu0 0.0
    %731 = vmatpush2.msra.mxu0 0.0
    %732 = vmatprep.subr.mxu0 0.0
    %733 = vmatpush2.msra.mxu0 0.0
    %734 = vmatprep.subr.mxu0 0.0
    %735 = vmatpush2.msra.mxu0 0.0
    %736 = vmatprep.subr.mxu0 0.0
    %737 = vmatpush2.msra.mxu0 0.0
    %738 = vmatprep.subr.mxu0 0.0
    %739 = vmatpush2.msra.mxu0 0.0
    %740 = vmatprep.subr.mxu0 0.0
    %741 = vmatpush2.msra.mxu0 0.0
    %742 = vmatprep.subr.mxu0 0.0
    %743 = vmatpush2.msra.mxu0 0.0
    %744 = vmatprep.subr.mxu0 0.0
    %745 = vmatpush2.msra.mxu0 0.0
    %746 = vmatprep.subr.mxu0 0.0
    %747 = vmatpush2.msra.mxu0 0.0
    %748 = vmatprep.subr.mxu0 0.0
    %749 = vmatpush2.msra.mxu0 0.0
    %750 = vmatprep.subr.mxu0 0.0
    %751 = vmatpush2.msra.mxu0 0.0
    %752 = vmatprep.subr.mxu0 0.0
    %753 = vmatpush2.msra.mxu0 0.0
    %754 = vmatprep.subr.mxu0 0.0
    %755 = vmatpush2.msra.mxu0 0.0
    %756 = vmatprep.subr.mxu0 0.0
    %757 = vmatpush2.msra.mxu0 0.0
    %758 = vmatprep.subr.mxu0 0.0
    %759 = vmatpush2.msra.mxu0 0.0
    %760 = vmatprep.subr.mxu0 0.0
    %761 = vmatpush2.msra.mxu0 0.0
    %762 = vmatprep.mubr.f32.mxu0 0.0
    %763 = vmatmul.mubr.f32.gmra.mxu0 %v696
    %v764 = vpop.f32.mrf.mxu0
    %v765 = vadd.f32 0.0, %v764
    %v766 = vpop.f32.mrf.mxu0
    %767 = vdwg.mxu0
    %v768 = vsel %vm605, %v765, -inf
    %769 = vmax.xlane.f32.xlu0 %v768
    %v770 = vpop.xlane.xlu0 %769
    %v771 = vsub.f32 %v765, %v770
    %v772 = vmul.f32 %v771, 1.442695
    %v773 = vpow.pop %v772
    %v774 = vsel %vm605, %v773, 0.0
    %775 = vadd.xlane.f32.xlu0 %v774
    %v776 = vpop.xlane.xlu0 %775
    %v777 = vrcp.pop %v776
    %v778 = vmul.f32 %v773, %v777
    %v780 = vsel %vm605, %v416, 0
    %v783 = vsel %vm605, %v778, 0
    %785 = vmatprep.subr.mxu0 0.0
    %786 = vmatpush1.xpose.msra.mxu0 0.0
    %787 = vmatprep.subr.mxu0 0.0
    %788 = vmatpush1.xpose.msra.mxu0 0.0
    %789 = vmatprep.subr.mxu0 0.0
    %790 = vmatpush1.xpose.msra.mxu0 0.0
    %791 = vmatprep.subr.mxu0 0.0
    %792 = vmatpush1.xpose.msra.mxu0 0.0
    %793 = vmatprep.subr.mxu0 0.0
    %794 = vmatpush1.xpose.msra.mxu0 0.0
    %795 = vmatprep.subr.mxu0 0.0
    %796 = vmatpush1.xpose.msra.mxu0 0.0
    %797 = vmatprep.subr.mxu0 0.0
    %798 = vmatpush1.xpose.msra.mxu0 0.0
    %799 = vmatprep.subr.mxu0 0.0
    %800 = vmatpush1.xpose.msra.mxu0 0.0
    %801 = vmatprep.subr.mxu0 0.0
    %802 = vmatpush1.xpose.msra.mxu0 0.0
    %803 = vmatprep.subr.mxu0 0.0
    %804 = vmatpush1.xpose.msra.mxu0 0.0
    %805 = vmatprep.subr.mxu0 0.0
    %806 = vmatpush1.xpose.msra.mxu0 0.0
    %807 = vmatprep.subr.mxu0 0.0
    %808 = vmatpush1.xpose.msra.mxu0 0.0
    %809 = vmatprep.subr.mxu0 0.0
    %810 = vmatpush1.xpose.msra.mxu0 0.0
    %811 = vmatprep.subr.mxu0 0.0
    %812 = vmatpush1.xpose.msra.mxu0 0.0
    %813 = vmatprep.subr.mxu0 0.0
    %814 = vmatpush1.xpose.msra.mxu0 0.0
    %815 = vmatprep.subr.mxu0 0.0
    %816 = vmatpush1.xpose.msra.mxu0 %v783
    %817 = vmatprep.subr.mxu0 0.0
    %818 = vmatpush2.xpose.msra.mxu0 0.0
    %819 = vmatprep.subr.mxu0 0.0
    %820 = vmatpush2.xpose.msra.mxu0 0.0
    %821 = vmatprep.subr.mxu0 0.0
    %822 = vmatpush2.xpose.msra.mxu0 0.0
    %823 = vmatprep.subr.mxu0 0.0
    %824 = vmatpush2.xpose.msra.mxu0 0.0
    %825 = vmatprep.subr.mxu0 0.0
    %826 = vmatpush2.xpose.msra.mxu0 0.0
    %827 = vmatprep.subr.mxu0 0.0
    %828 = vmatpush2.xpose.msra.mxu0 0.0
    %829 = vmatprep.subr.mxu0 0.0
    %830 = vmatpush2.xpose.msra.mxu0 0.0
    %831 = vmatprep.subr.mxu0 0.0
    %832 = vmatpush2.xpose.msra.mxu0 0.0
    %833 = vmatprep.subr.mxu0 0.0
    %834 = vmatpush2.xpose.msra.mxu0 0.0
    %835 = vmatprep.subr.mxu0 0.0
    %836 = vmatpush2.xpose.msra.mxu0 0.0
    %837 = vmatprep.subr.mxu0 0.0
    %838 = vmatpush2.xpose.msra.mxu0 0.0
    %839 = vmatprep.subr.mxu0 0.0
    %840 = vmatpush2.xpose.msra.mxu0 0.0
    %841 = vmatprep.subr.mxu0 0.0
    %842 = vmatpush2.xpose.msra.mxu0 0.0
    %843 = vmatprep.subr.mxu0 0.0
    %844 = vmatpush2.xpose.msra.mxu0 0.0
    %845 = vmatprep.subr.mxu0 0.0
    %846 = vmatpush2.xpose.msra.mxu0 0.0
    %847 = vmatprep.subr.mxu0 0.0
    %848 = vmatpush2.xpose.msra.mxu0 0.0
    %849 = vmatprep.mubr.f32.mxu0 0.0
    %850 = vmatmul.mubr.f32.gmra.mxu0 %v780
    %v851 = vpop.f32.mrf.mxu0
    %v852 = vadd.f32 0.0, %v851
    %v853 = vpop.f32.mrf.mxu0
    %854 = vdwg.mxu0
    %855 = vst.msk [vmem:[#allocation3 + $0x8] sm:$0xff] %vm173, %v852
    %856 = vrot.lane.b32.xlu0 %v531, 112
    %v857 = vpop.permute.xlu0 %856
    %v858 = vsel %vm173, %v857, 0
    %860 = vmatprep.subr.mxu0 0.0
    %861 = vmatpush1.msra.mxu0 0.0
    %862 = vmatprep.subr.mxu0 0.0
    %863 = vmatpush1.msra.mxu0 0.0
    %864 = vmatprep.subr.mxu0 0.0
    %865 = vmatpush1.msra.mxu0 0.0
    %866 = vmatprep.subr.mxu0 0.0
    %867 = vmatpush1.msra.mxu0 0.0
    %868 = vmatprep.subr.mxu0 0.0
    %869 = vmatpush1.msra.mxu0 0.0
    %870 = vmatprep.subr.mxu0 0.0
    %871 = vmatpush1.msra.mxu0 0.0
    %872 = vmatprep.subr.mxu0 0.0
    %873 = vmatpush1.msra.mxu0 0.0
    %874 = vmatprep.subr.mxu0 0.0
    %875 = vmatpush1.msra.mxu0 0.0
    %876 = vmatprep.subr.mxu0 0.0
    %877 = vmatpush1.msra.mxu0 0.0
    %878 = vmatprep.subr.mxu0 0.0
    %879 = vmatpush1.msra.mxu0 0.0
    %880 = vmatprep.subr.mxu0 0.0
    %881 = vmatpush1.msra.mxu0 0.0
    %882 = vmatprep.subr.mxu0 0.0
    %883 = vmatpush1.msra.mxu0 0.0
    %884 = vmatprep.subr.mxu0 0.0
    %885 = vmatpush1.msra.mxu0 0.0
    %886 = vmatprep.subr.mxu0 0.0
    %887 = vmatpush1.msra.mxu0 0.0
    %888 = vmatprep.subr.mxu0 0.0
    %889 = vmatpush1.msra.mxu0 0.0
    %890 = vmatprep.subr.mxu0 0.0
    %891 = vmatpush1.msra.mxu0 %v439
    %892 = vmatprep.subr.mxu0 0.0
    %893 = vmatpush2.msra.mxu0 0.0
    %894 = vmatprep.subr.mxu0 0.0
    %895 = vmatpush2.msra.mxu0 0.0
    %896 = vmatprep.subr.mxu0 0.0
    %897 = vmatpush2.msra.mxu0 0.0
    %898 = vmatprep.subr.mxu0 0.0
    %899 = vmatpush2.msra.mxu0 0.0
    %900 = vmatprep.subr.mxu0 0.0
    %901 = vmatpush2.msra.mxu0 0.0
    %902 = vmatprep.subr.mxu0 0.0
    %903 = vmatpush2.msra.mxu0 0.0
    %904 = vmatprep.subr.mxu0 0.0
    %905 = vmatpush2.msra.mxu0 0.0
    %906 = vmatprep.subr.mxu0 0.0
    %907 = vmatpush2.msra.mxu0 0.0
    %908 = vmatprep.subr.mxu0 0.0
    %909 = vmatpush2.msra.mxu0 0.0
    %910 = vmatprep.subr.mxu0 0.0
    %911 = vmatpush2.msra.mxu0 0.0
    %912 = vmatprep.subr.mxu0 0.0
    %913 = vmatpush2.msra.mxu0 0.0
    %914 = vmatprep.subr.mxu0 0.0
    %915 = vmatpush2.msra.mxu0 0.0
    %916 = vmatprep.subr.mxu0 0.0
    %917 = vmatpush2.msra.mxu0 0.0
    %918 = vmatprep.subr.mxu0 0.0
    %919 = vmatpush2.msra.mxu0 0.0
    %920 = vmatprep.subr.mxu0 0.0
    %921 = vmatpush2.msra.mxu0 0.0
    %922 = vmatprep.subr.mxu0 0.0
    %923 = vmatpush2.msra.mxu0 0.0
    %924 = vmatprep.mubr.f32.mxu0 0.0
    %925 = vmatmul.mubr.f32.gmra.mxu0 %v858
    %v926 = vpop.f32.mrf.mxu0
    %v927 = vadd.f32 0.0, %v926
    %v928 = vpop.f32.mrf.mxu0
    %929 = vdwg.mxu0
    %v930 = vsel %vm605, %v927, -inf
    %931 = vmax.xlane.f32.xlu0 %v930
    %v932 = vpop.xlane.xlu0 %931
    %v933 = vsub.f32 %v927, %v932
    %v934 = vmul.f32 %v933, 1.442695
    %v935 = vpow.pop %v934
    %v936 = vsel %vm605, %v935, 0.0
    %937 = vadd.xlane.f32.xlu0 %v936
    %v938 = vpop.xlane.xlu0 %937
    %v939 = vrcp.pop %v938
    %v940 = vmul.f32 %v935, %v939
    %v942 = vsel %vm605, %v421, 0
    %v945 = vsel %vm605, %v940, 0
    %947 = vmatprep.subr.mxu0 0.0
    %948 = vmatpush1.xpose.msra.mxu0 0.0
    %949 = vmatprep.subr.mxu0 0.0
    %950 = vmatpush1.xpose.msra.mxu0 0.0
    %951 = vmatprep.subr.mxu0 0.0
    %952 = vmatpush1.xpose.msra.mxu0 0.0
    %953 = vmatprep.subr.mxu0 0.0
    %954 = vmatpush1.xpose.msra.mxu0 0.0
    %955 = vmatprep.subr.mxu0 0.0
    %956 = vmatpush1.xpose.msra.mxu0 0.0
    %957 = vmatprep.subr.mxu0 0.0
    %958 = vmatpush1.xpose.msra.mxu0 0.0
    %959 = vmatprep.subr.mxu0 0.0
    %960 = vmatpush1.xpose.msra.mxu0 0.0
    %961 = vmatprep.subr.mxu0 0.0
    %962 = vmatpush1.xpose.msra.mxu0 0.0
    %963 = vmatprep.subr.mxu0 0.0
    %964 = vmatpush1.xpose.msra.mxu0 0.0
    %965 = vmatprep.subr.mxu0 0.0
    %966 = vmatpush1.xpose.msra.mxu0 0.0
    %967 = vmatprep.subr.mxu0 0.0
    %968 = vmatpush1.xpose.msra.mxu0 0.0
    %969 = vmatprep.subr.mxu0 0.0
    %970 = vmatpush1.xpose.msra.mxu0 0.0
    %971 = vmatprep.subr.mxu0 0.0
    %972 = vmatpush1.xpose.msra.mxu0 0.0
    %973 = vmatprep.subr.mxu0 0.0
    %974 = vmatpush1.xpose.msra.mxu0 0.0
    %975 = vmatprep.subr.mxu0 0.0
    %976 = vmatpush1.xpose.msra.mxu0 0.0
    %977 = vmatprep.subr.mxu0 0.0
    %978 = vmatpush1.xpose.msra.mxu0 %v945
    %979 = vmatprep.subr.mxu0 0.0
    %980 = vmatpush2.xpose.msra.mxu0 0.0
    %981 = vmatprep.subr.mxu0 0.0
    %982 = vmatpush2.xpose.msra.mxu0 0.0
    %983 = vmatprep.subr.mxu0 0.0
    %984 = vmatpush2.xpose.msra.mxu0 0.0
    %985 = vmatprep.subr.mxu0 0.0
    %986 = vmatpush2.xpose.msra.mxu0 0.0
    %987 = vmatprep.subr.mxu0 0.0
    %988 = vmatpush2.xpose.msra.mxu0 0.0
    %989 = vmatprep.subr.mxu0 0.0
    %990 = vmatpush2.xpose.msra.mxu0 0.0
    %991 = vmatprep.subr.mxu0 0.0
    %992 = vmatpush2.xpose.msra.mxu0 0.0
    %993 = vmatprep.subr.mxu0 0.0
    %994 = vmatpush2.xpose.msra.mxu0 0.0
    %995 = vmatprep.subr.mxu0 0.0
    %996 = vmatpush2.xpose.msra.mxu0 0.0
    %997 = vmatprep.subr.mxu0 0.0
    %998 = vmatpush2.xpose.msra.mxu0 0.0
    %999 = vmatprep.subr.mxu0 0.0
    %1000 = vmatpush2.xpose.msra.mxu0 0.0
    %1001 = vmatprep.subr.mxu0 0.0
    %1002 = vmatpush2.xpose.msra.mxu0 0.0
    %1003 = vmatprep.subr.mxu0 0.0
    %1004 = vmatpush2.xpose.msra.mxu0 0.0
    %1005 = vmatprep.subr.mxu0 0.0
    %1006 = vmatpush2.xpose.msra.mxu0 0.0
    %1007 = vmatprep.subr.mxu0 0.0
    %1008 = vmatpush2.xpose.msra.mxu0 0.0
    %1009 = vmatprep.subr.mxu0 0.0
    %1010 = vmatpush2.xpose.msra.mxu0 0.0
    %1011 = vmatprep.mubr.f32.mxu0 0.0
    %1012 = vmatmul.mubr.f32.gmra.mxu0 %v942
    %v1013 = vpop.f32.mrf.mxu0
    %v1014 = vadd.f32 0.0, %v1013
    %v1015 = vpop.f32.mrf.mxu0
    %1016 = vdwg.mxu0
    %1017 = vst.msk [vmem:[#allocation3 + $0x10] sm:$0xff] %vm173, %v1014
    %1018 = vrot.lane.b32.xlu0 %v531, 104
    %v1019 = vpop.permute.xlu0 %1018
    %v1020 = vsel %vm173, %v1019, 0
    %1022 = vmatprep.subr.mxu0 0.0
    %1023 = vmatpush1.msra.mxu0 0.0
    %1024 = vmatprep.subr.mxu0 0.0
    %1025 = vmatpush1.msra.mxu0 0.0
    %1026 = vmatprep.subr.mxu0 0.0
    %1027 = vmatpush1.msra.mxu0 0.0
    %1028 = vmatprep.subr.mxu0 0.0
    %1029 = vmatpush1.msra.mxu0 0.0
    %1030 = vmatprep.subr.mxu0 0.0
    %1031 = vmatpush1.msra.mxu0 0.0
    %1032 = vmatprep.subr.mxu0 0.0
    %1033 = vmatpush1.msra.mxu0 0.0
    %1034 = vmatprep.subr.mxu0 0.0
    %1035 = vmatpush1.msra.mxu0 0.0
    %1036 = vmatprep.subr.mxu0 0.0
    %1037 = vmatpush1.msra.mxu0 0.0
    %1038 = vmatprep.subr.mxu0 0.0
    %1039 = vmatpush1.msra.mxu0 0.0
    %1040 = vmatprep.subr.mxu0 0.0
    %1041 = vmatpush1.msra.mxu0 0.0
    %1042 = vmatprep.subr.mxu0 0.0
    %1043 = vmatpush1.msra.mxu0 0.0
    %1044 = vmatprep.subr.mxu0 0.0
    %1045 = vmatpush1.msra.mxu0 0.0
    %1046 = vmatprep.subr.mxu0 0.0
    %1047 = vmatpush1.msra.mxu0 0.0
    %1048 = vmatprep.subr.mxu0 0.0
    %1049 = vmatpush1.msra.mxu0 0.0
    %1050 = vmatprep.subr.mxu0 0.0
    %1051 = vmatpush1.msra.mxu0 0.0
    %1052 = vmatprep.subr.mxu0 0.0
    %1053 = vmatpush1.msra.mxu0 %v440
    %1054 = vmatprep.subr.mxu0 0.0
    %1055 = vmatpush2.msra.mxu0 0.0
    %1056 = vmatprep.subr.mxu0 0.0
    %1057 = vmatpush2.msra.mxu0 0.0
    %1058 = vmatprep.subr.mxu0 0.0
    %1059 = vmatpush2.msra.mxu0 0.0
    %1060 = vmatprep.subr.mxu0 0.0
    %1061 = vmatpush2.msra.mxu0 0.0
    %1062 = vmatprep.subr.mxu0 0.0
    %1063 = vmatpush2.msra.mxu0 0.0
    %1064 = vmatprep.subr.mxu0 0.0
    %1065 = vmatpush2.msra.mxu0 0.0
    %1066 = vmatprep.subr.mxu0 0.0
    %1067 = vmatpush2.msra.mxu0 0.0
    %1068 = vmatprep.subr.mxu0 0.0
    %1069 = vmatpush2.msra.mxu0 0.0
    %1070 = vmatprep.subr.mxu0 0.0
    %1071 = vmatpush2.msra.mxu0 0.0
    %1072 = vmatprep.subr.mxu0 0.0
    %1073 = vmatpush2.msra.mxu0 0.0
    %1074 = vmatprep.subr.mxu0 0.0
    %1075 = vmatpush2.msra.mxu0 0.0
    %1076 = vmatprep.subr.mxu0 0.0
    %1077 = vmatpush2.msra.mxu0 0.0
    %1078 = vmatprep.subr.mxu0 0.0
    %1079 = vmatpush2.msra.mxu0 0.0
    %1080 = vmatprep.subr.mxu0 0.0
    %1081 = vmatpush2.msra.mxu0 0.0
    %1082 = vmatprep.subr.mxu0 0.0
    %1083 = vmatpush2.msra.mxu0 0.0
    %1084 = vmatprep.subr.mxu0 0.0
    %1085 = vmatpush2.msra.mxu0 0.0
    %1086 = vmatprep.mubr.f32.mxu0 0.0
    %1087 = vmatmul.mubr.f32.gmra.mxu0 %v1020
    %v1088 = vpop.f32.mrf.mxu0
    %v1089 = vadd.f32 0.0, %v1088
    %v1090 = vpop.f32.mrf.mxu0
    %1091 = vdwg.mxu0
    %v1092 = vsel %vm605, %v1089, -inf
    %1093 = vmax.xlane.f32.xlu0 %v1092
    %v1094 = vpop.xlane.xlu0 %1093
    %v1095 = vsub.f32 %v1089, %v1094
    %v1096 = vmul.f32 %v1095, 1.442695
    %v1097 = vpow.pop %v1096
    %v1098 = vsel %vm605, %v1097, 0.0
    %1099 = vadd.xlane.f32.xlu0 %v1098
    %v1100 = vpop.xlane.xlu0 %1099
    %v1101 = vrcp.pop %v1100
    %v1102 = vmul.f32 %v1097, %v1101
    %v1104 = vsel %vm605, %v426, 0
    %v1107 = vsel %vm605, %v1102, 0
    %1109 = vmatprep.subr.mxu0 0.0
    %1110 = vmatpush1.xpose.msra.mxu0 0.0
    %1111 = vmatprep.subr.mxu0 0.0
    %1112 = vmatpush1.xpose.msra.mxu0 0.0
    %1113 = vmatprep.subr.mxu0 0.0
    %1114 = vmatpush1.xpose.msra.mxu0 0.0
    %1115 = vmatprep.subr.mxu0 0.0
    %1116 = vmatpush1.xpose.msra.mxu0 0.0
    %1117 = vmatprep.subr.mxu0 0.0
    %1118 = vmatpush1.xpose.msra.mxu0 0.0
    %1119 = vmatprep.subr.mxu0 0.0
    %1120 = vmatpush1.xpose.msra.mxu0 0.0
    %1121 = vmatprep.subr.mxu0 0.0
    %1122 = vmatpush1.xpose.msra.mxu0 0.0
    %1123 = vmatprep.subr.mxu0 0.0
    %1124 = vmatpush1.xpose.msra.mxu0 0.0
    %1125 = vmatprep.subr.mxu0 0.0
    %1126 = vmatpush1.xpose.msra.mxu0 0.0
    %1127 = vmatprep.subr.mxu0 0.0
    %1128 = vmatpush1.xpose.msra.mxu0 0.0
    %1129 = vmatprep.subr.mxu0 0.0
    %1130 = vmatpush1.xpose.msra.mxu0 0.0
    %1131 = vmatprep.subr.mxu0 0.0
    %1132 = vmatpush1.xpose.msra.mxu0 0.0
    %1133 = vmatprep.subr.mxu0 0.0
    %1134 = vmatpush1.xpose.msra.mxu0 0.0
    %1135 = vmatprep.subr.mxu0 0.0
    %1136 = vmatpush1.xpose.msra.mxu0 0.0
    %1137 = vmatprep.subr.mxu0 0.0
    %1138 = vmatpush1.xpose.msra.mxu0 0.0
    %1139 = vmatprep.subr.mxu0 0.0
    %1140 = vmatpush1.xpose.msra.mxu0 %v1107
    %1141 = vmatprep.subr.mxu0 0.0
    %1142 = vmatpush2.xpose.msra.mxu0 0.0
    %1143 = vmatprep.subr.mxu0 0.0
    %1144 = vmatpush2.xpose.msra.mxu0 0.0
    %1145 = vmatprep.subr.mxu0 0.0
    %1146 = vmatpush2.xpose.msra.mxu0 0.0
    %1147 = vmatprep.subr.mxu0 0.0
    %1148 = vmatpush2.xpose.msra.mxu0 0.0
    %1149 = vmatprep.subr.mxu0 0.0
    %1150 = vmatpush2.xpose.msra.mxu0 0.0
    %1151 = vmatprep.subr.mxu0 0.0
    %1152 = vmatpush2.xpose.msra.mxu0 0.0
    %1153 = vmatprep.subr.mxu0 0.0
    %1154 = vmatpush2.xpose.msra.mxu0 0.0
    %1155 = vmatprep.subr.mxu0 0.0
    %1156 = vmatpush2.xpose.msra.mxu0 0.0
    %1157 = vmatprep.subr.mxu0 0.0
    %1158 = vmatpush2.xpose.msra.mxu0 0.0
    %1159 = vmatprep.subr.mxu0 0.0
    %1160 = vmatpush2.xpose.msra.mxu0 0.0
    %1161 = vmatprep.subr.mxu0 0.0
    %1162 = vmatpush2.xpose.msra.mxu0 0.0
    %1163 = vmatprep.subr.mxu0 0.0
    %1164 = vmatpush2.xpose.msra.mxu0 0.0
    %1165 = vmatprep.subr.mxu0 0.0
    %1166 = vmatpush2.xpose.msra.mxu0 0.0
    %1167 = vmatprep.subr.mxu0 0.0
    %1168 = vmatpush2.xpose.msra.mxu0 0.0
    %1169 = vmatprep.subr.mxu0 0.0
    %1170 = vmatpush2.xpose.msra.mxu0 0.0
    %1171 = vmatprep.subr.mxu0 0.0
    %1172 = vmatpush2.xpose.msra.mxu0 0.0
    %1173 = vmatprep.mubr.f32.mxu0 0.0
    %1174 = vmatmul.mubr.f32.gmra.mxu0 %v1104
    %v1175 = vpop.f32.mrf.mxu0
    %v1176 = vadd.f32 0.0, %v1175
    %v1177 = vpop.f32.mrf.mxu0
    %1178 = vdwg.mxu0
    %1179 = vst.msk [vmem:[#allocation3 + $0x18] sm:$0xff] %vm173, %v1176
    %v1180 = vld [vmem:[#allocation3] sm:$0xff]
    %v1181 = vld [vmem:[#allocation3 + $0x8] sm:$0xff]
    %v1182 = vld [vmem:[#allocation3 + $0x10] sm:$0xff]
    %v1183 = vld [vmem:[#allocation3 + $0x18] sm:$0xff]
    %1185 = vset.pattern.permute.xlu0 0
    %1186 = vperm.xlu0 %1185, %v165
    %v1187 = vpop.permute.xlu0 %1186
    %1190 = vset.pattern.permute.xlu0 0
    %1191 = vperm.xlu0 %1190, %v166
    %v1192 = vpop.permute.xlu0 %1191
    %1195 = vset.pattern.permute.xlu0 0
    %1196 = vperm.xlu0 %1195, %v167
    %v1197 = vpop.permute.xlu0 %1196
    %1200 = vset.pattern.permute.xlu0 0
    %1201 = vperm.xlu0 %1200, %v168
    %v1202 = vpop.permute.xlu0 %1201
    %v1205 = vsel %vm267, %v161, 0
    %v1208 = vsel %vm267, %v162, 0
    %v1211 = vsel %vm267, %v163, 0
    %v1214 = vsel %vm267, %v164, 0
    %1216 = vmatprep.subr.mxu0 0.0
    %1217 = vmatpush1.msra.mxu0 0.0
    %1218 = vmatprep.subr.mxu0 0.0
    %1219 = vmatpush1.msra.mxu0 0.0
    %1220 = vmatprep.subr.mxu0 0.0
    %1221 = vmatpush1.msra.mxu0 0.0
    %1222 = vmatprep.subr.mxu0 0.0
    %1223 = vmatpush1.msra.mxu0 0.0
    %1224 = vmatprep.subr.mxu0 0.0
    %1225 = vmatpush1.msra.mxu0 0.0
    %1226 = vmatprep.subr.mxu0 0.0
    %1227 = vmatpush1.msra.mxu0 0.0
    %1228 = vmatprep.subr.mxu0 0.0
    %1229 = vmatpush1.msra.mxu0 0.0
    %1230 = vmatprep.subr.mxu0 0.0
    %1231 = vmatpush1.msra.mxu0 0.0
    %1232 = vmatprep.subr.mxu0 0.0
    %1233 = vmatpush1.msra.mxu0 0.0
    %1234 = vmatprep.subr.mxu0 0.0
    %1235 = vmatpush1.msra.mxu0 0.0
    %1236 = vmatprep.subr.mxu0 0.0
    %1237 = vmatpush1.msra.mxu0 0.0
    %1238 = vmatprep.subr.mxu0 0.0
    %1239 = vmatpush1.msra.mxu0 0.0
    %1240 = vmatprep.subr.mxu0 0.0
    %1241 = vmatpush1.msra.mxu0 %v1183
    %1242 = vmatprep.subr.mxu0 0.0
    %1243 = vmatpush1.msra.mxu0 %v1182
    %1244 = vmatprep.subr.mxu0 0.0
    %1245 = vmatpush1.msra.mxu0 %v1181
    %1246 = vmatprep.subr.mxu0 0.0
    %1247 = vmatpush1.msra.mxu0 %v1180
    %1248 = vmatprep.subr.mxu0 0.0
    %1249 = vmatpush2.msra.mxu0 0.0
    %1250 = vmatprep.subr.mxu0 0.0
    %1251 = vmatpush2.msra.mxu0 0.0
    %1252 = vmatprep.subr.mxu0 0.0
    %1253 = vmatpush2.msra.mxu0 0.0
    %1254 = vmatprep.subr.mxu0 0.0
    %1255 = vmatpush2.msra.mxu0 0.0
    %1256 = vmatprep.subr.mxu0 0.0
    %1257 = vmatpush2.msra.mxu0 0.0
    %1258 = vmatprep.subr.mxu0 0.0
    %1259 = vmatpush2.msra.mxu0 0.0
    %1260 = vmatprep.subr.mxu0 0.0
    %1261 = vmatpush2.msra.mxu0 0.0
    %1262 = vmatprep.subr.mxu0 0.0
    %1263 = vmatpush2.msra.mxu0 0.0
    %1264 = vmatprep.subr.mxu0 0.0
    %1265 = vmatpush2.msra.mxu0 0.0
    %1266 = vmatprep.subr.mxu0 0.0
    %1267 = vmatpush2.msra.mxu0 0.0
    %1268 = vmatprep.subr.mxu0 0.0
    %1269 = vmatpush2.msra.mxu0 0.0
    %1270 = vmatprep.subr.mxu0 0.0
    %1271 = vmatpush2.msra.mxu0 0.0
    %1272 = vmatprep.subr.mxu0 0.0
    %1273 = vmatpush2.msra.mxu0 0.0
    %1274 = vmatprep.subr.mxu0 0.0
    %1275 = vmatpush2.msra.mxu0 0.0
    %1276 = vmatprep.subr.mxu0 0.0
    %1277 = vmatpush2.msra.mxu0 0.0
    %1278 = vmatprep.subr.mxu0 0.0
    %1279 = vmatpush2.msra.mxu0 0.0
    %1280 = vmatprep.mubr.f32.mxu0 0.0
    %1281 = vmatmul.mubr.f32.gmra.mxu0 %v1205
    %v1282 = vpop.f32.mrf.mxu0
    %v1283 = vadd.f32 %v1187, %v1282
    %v1284 = vpop.f32.mrf.mxu0
    %1285 = vmatprep.mubr.f32.mxu0 0.0
    %1286 = vmatmul.mubr.f32.gmra.mxu0 %v1208
    %v1287 = vpop.f32.mrf.mxu0
    %v1288 = vadd.f32 %v1192, %v1287
    %v1289 = vpop.f32.mrf.mxu0
    %1290 = vmatprep.mubr.f32.mxu0 0.0
    %1291 = vmatmul.mubr.f32.gmra.mxu0 %v1211
    %v1292 = vpop.f32.mrf.mxu0
    %v1293 = vadd.f32 %v1197, %v1292
    %v1294 = vpop.f32.mrf.mxu0
    %1295 = vmatprep.mubr.f32.mxu0 0.0
    %1296 = vmatmul.mubr.f32.gmra.mxu0 %v1214
    %v1297 = vpop.f32.mrf.mxu0
    %v1298 = vadd.f32 %v1202, %v1297
    %v1299 = vpop.f32.mrf.mxu0
    %1300 = vdwg.mxu0
    %1301 = vst.msk [vmem:[%s11] sm:$0xff] %vm173, %v1283
    %1302 = vst.msk [vmem:[%s11 + $0x8] sm:$0xff] %vm173, %v1288
    %1303 = vst.msk [vmem:[%s11 + $0x10] sm:$0xff] %vm173, %v1293
    %1304 = vst.msk [vmem:[%s11 + $0x18] sm:$0xff] %vm173, %v1298
    %s1305 = scalar_lea.vmem %s0, 32
    %v1306 = vld [vmem:[%s1305] sm:$0xff]
    %v1307 = vld [vmem:[%s1305 + $0x8] sm:$0xff]
    %v1308 = vld [vmem:[%s1305 + $0x10] sm:$0xff]
    %v1309 = vld [vmem:[%s1305 + $0x18] sm:$0xff]
    %1310 = vst.msk [vmem:[#allocation2] sm:$0xff] %vm173, %v1306
    %1311 = vst.msk [vmem:[#allocation2 + $0x8] sm:$0xff] %vm173, %v1307
    %1312 = vst.msk [vmem:[#allocation2 + $0x10] sm:$0xff] %vm173, %v1308
    %1313 = vst.msk [vmem:[#allocation2 + $0x18] sm:$0xff] %vm173, %v1309
    %s1314 = scalar_lea.vmem %s1, 32
    %v1315 = vld [vmem:[%s1314] sm:$0xff]
    %v1316 = vld [vmem:[%s1314 + $0x8] sm:$0xff]
    %v1317 = vld [vmem:[%s1314 + $0x10] sm:$0xff]
    %v1318 = vld [vmem:[%s1314 + $0x18] sm:$0xff]
    %1323 = vrot.lane.b32.xlu0 %v1315, 8
    %v1324 = vpop.permute.xlu0 %1323
    %1325 = vrot.lane.b32.xlu0 %v1316, 8
    %v1326 = vpop.permute.xlu0 %1325
    %1327 = vrot.lane.b32.xlu0 %v1317, 8
    %v1328 = vpop.permute.xlu0 %1327
    %1329 = vrot.lane.b32.xlu0 %v1318, 8
    %v1330 = vpop.permute.xlu0 %1329
    %1335 = vst.msk [vmem:[#allocation2] sm:$0xff] %vm198, %v1324
    %1336 = vst.msk [vmem:[#allocation2 + $0x8] sm:$0xff] %vm198, %v1326
    %1337 = vst.msk [vmem:[#allocation2 + $0x10] sm:$0xff] %vm198, %v1328
    %1338 = vst.msk [vmem:[#allocation2 + $0x18] sm:$0xff] %vm198, %v1330
    %v1339 = vld [vmem:[#allocation2] sm:$0xff]
    %v1340 = vld [vmem:[#allocation2 + $0x8] sm:$0xff]
    %v1341 = vld [vmem:[#allocation2 + $0x10] sm:$0xff]
    %v1342 = vld [vmem:[#allocation2 + $0x18] sm:$0xff]
    %1343 = vmatprep.subr.mxu0 0.0
    %1344 = vmatpush1.msra.mxu0 0.0
    %1345 = vmatprep.subr.mxu0 0.0
    %1346 = vmatpush1.msra.mxu0 0.0
    %1347 = vmatprep.subr.mxu0 0.0
    %1348 = vmatpush1.msra.mxu0 0.0
    %1349 = vmatprep.subr.mxu0 0.0
    %1350 = vmatpush1.msra.mxu0 0.0
    %1351 = vmatprep.subr.mxu0 0.0
    %1352 = vmatpush1.msra.mxu0 0.0
    %1353 = vmatprep.subr.mxu0 0.0
    %1354 = vmatpush1.msra.mxu0 0.0
    %1355 = vmatprep.subr.mxu0 0.0
    %1356 = vmatpush1.msra.mxu0 0.0
    %1357 = vmatprep.subr.mxu0 0.0
    %1358 = vmatpush1.msra.mxu0 0.0
    %1359 = vmatprep.subr.mxu0 0.0
    %1360 = vmatpush1.msra.mxu0 0.0
    %1361 = vmatprep.subr.mxu0 0.0
    %1362 = vmatpush1.msra.mxu0 0.0
    %1363 = vmatprep.subr.mxu0 0.0
    %1364 = vmatpush1.msra.mxu0 0.0
    %1365 = vmatprep.subr.mxu0 0.0
    %1366 = vmatpush1.msra.mxu0 0.0
    %1367 = vmatprep.subr.mxu0 0.0
    %1368 = vmatpush1.msra.mxu0 %v1342
    %1369 = vmatprep.subr.mxu0 0.0
    %1370 = vmatpush1.msra.mxu0 %v1341
    %1371 = vmatprep.subr.mxu0 0.0
    %1372 = vmatpush1.msra.mxu0 %v1340
    %1373 = vmatprep.subr.mxu0 0.0
    %1374 = vmatpush1.msra.mxu0 %v1339
    %1375 = vmatprep.subr.mxu0 0.0
    %1376 = vmatpush2.msra.mxu0 0.0
    %1377 = vmatprep.subr.mxu0 0.0
    %1378 = vmatpush2.msra.mxu0 0.0
    %1379 = vmatprep.subr.mxu0 0.0
    %1380 = vmatpush2.msra.mxu0 0.0
    %1381 = vmatprep.subr.mxu0 0.0
    %1382 = vmatpush2.msra.mxu0 0.0
    %1383 = vmatprep.subr.mxu0 0.0
    %1384 = vmatpush2.msra.mxu0 0.0
    %1385 = vmatprep.subr.mxu0 0.0
    %1386 = vmatpush2.msra.mxu0 0.0
    %1387 = vmatprep.subr.mxu0 0.0
    %1388 = vmatpush2.msra.mxu0 0.0
    %1389 = vmatprep.subr.mxu0 0.0
    %1390 = vmatpush2.msra.mxu0 0.0
    %1391 = vmatprep.subr.mxu0 0.0
    %1392 = vmatpush2.msra.mxu0 0.0
    %1393 = vmatprep.subr.mxu0 0.0
    %1394 = vmatpush2.msra.mxu0 0.0
    %1395 = vmatprep.subr.mxu0 0.0
    %1396 = vmatpush2.msra.mxu0 0.0
    %1397 = vmatprep.subr.mxu0 0.0
    %1398 = vmatpush2.msra.mxu0 0.0
    %1399 = vmatprep.subr.mxu0 0.0
    %1400 = vmatpush2.msra.mxu0 0.0
    %1401 = vmatprep.subr.mxu0 0.0
    %1402 = vmatpush2.msra.mxu0 0.0
    %1403 = vmatprep.subr.mxu0 0.0
    %1404 = vmatpush2.msra.mxu0 0.0
    %1405 = vmatprep.subr.mxu0 0.0
    %1406 = vmatpush2.msra.mxu0 0.0
    %1407 = vmatprep.mubr.f32.mxu0 0.0
    %1408 = vmatmul.mubr.f32.gmra.mxu0 %v269
    %v1409 = vpop.f32.mrf.mxu0
    %v1410 = vadd.f32 %v210, %v1409
    %v1411 = vpop.f32.mrf.mxu0
    %1412 = vmatprep.mubr.f32.mxu0 0.0
    %1413 = vmatmul.mubr.f32.gmra.mxu0 %v272
    %v1414 = vpop.f32.mrf.mxu0
    %v1415 = vadd.f32 %v215, %v1414
    %v1416 = vpop.f32.mrf.mxu0
    %1417 = vmatprep.mubr.f32.mxu0 0.0
    %1418 = vmatmul.mubr.f32.gmra.mxu0 %v275
    %v1419 = vpop.f32.mrf.mxu0
    %v1420 = vadd.f32 %v220, %v1419
    %v1421 = vpop.f32.mrf.mxu0
    %1422 = vmatprep.mubr.f32.mxu0 0.0
    %1423 = vmatmul.mubr.f32.gmra.mxu0 %v278
    %v1424 = vpop.f32.mrf.mxu0
    %v1425 = vadd.f32 %v225, %v1424
    %v1426 = vpop.f32.mrf.mxu0
    %1427 = vmatprep.mubr.f32.mxu0 0.0
    %1428 = vmatmul.mubr.f32.gmra.mxu0 %v281
    %v1429 = vpop.f32.mrf.mxu0
    %v1430 = vadd.f32 %v230, %v1429
    %v1431 = vpop.f32.mrf.mxu0
    %1432 = vmatprep.mubr.f32.mxu0 0.0
    %1433 = vmatmul.mubr.f32.gmra.mxu0 %v284
    %v1434 = vpop.f32.mrf.mxu0
    %v1435 = vadd.f32 %v235, %v1434
    %v1436 = vpop.f32.mrf.mxu0
    %1437 = vmatprep.mubr.f32.mxu0 0.0
    %1438 = vmatmul.mubr.f32.gmra.mxu0 %v287
    %v1439 = vpop.f32.mrf.mxu0
    %v1440 = vadd.f32 %v240, %v1439
    %v1441 = vpop.f32.mrf.mxu0
    %1442 = vmatprep.mubr.f32.mxu0 0.0
    %1443 = vmatmul.mubr.f32.gmra.mxu0 %v290
    %v1444 = vpop.f32.mrf.mxu0
    %v1445 = vadd.f32 %v245, %v1444
    %v1446 = vpop.f32.mrf.mxu0
    %1447 = vmatprep.mubr.f32.mxu0 0.0
    %1448 = vmatmul.mubr.f32.gmra.mxu0 %v293
    %v1449 = vpop.f32.mrf.mxu0
    %v1450 = vadd.f32 %v250, %v1449
    %v1451 = vpop.f32.mrf.mxu0
    %1452 = vmatprep.mubr.f32.mxu0 0.0
    %1453 = vmatmul.mubr.f32.gmra.mxu0 %v296
    %v1454 = vpop.f32.mrf.mxu0
    %v1455 = vadd.f32 %v255, %v1454
    %v1456 = vpop.f32.mrf.mxu0
    %1457 = vmatprep.mubr.f32.mxu0 0.0
    %1458 = vmatmul.mubr.f32.gmra.mxu0 %v299
    %v1459 = vpop.f32.mrf.mxu0
    %v1460 = vadd.f32 %v260, %v1459
    %v1461 = vpop.f32.mrf.mxu0
    %1462 = vmatprep.mubr.f32.mxu0 0.0
    %1463 = vmatmul.mubr.f32.gmra.mxu0 %v302
    %v1464 = vpop.f32.mrf.mxu0
    %v1465 = vadd.f32 %v265, %v1464
    %v1466 = vpop.f32.mrf.mxu0
    %1467 = vdwg.mxu0
    %v1468 = vmul.f32 %v1410, %v152
    %v1469 = vmul.f32 %v1415, %v153
    %v1470 = vmul.f32 %v1420, %v154
    %v1471 = vmul.f32 %v1425, %v155
    %v1472 = vmul.f32 %v1430, %v157
    %v1473 = vmul.f32 %v1435, %v158
    %v1474 = vmul.f32 %v1440, %v159
    %v1475 = vmul.f32 %v1445, %v160
    %v1476 = vadd.f32 %v1468, %v1472
    %v1477 = vadd.f32 %v1469, %v1473
    %v1478 = vadd.f32 %v1470, %v1474
    %v1479 = vadd.f32 %v1471, %v1475
    %s1480 = scalar_lea.vmem [#allocation4], 8
    %v1481 = vld [vmem:[%s1480] sm:$0xff]
    %v1483 = vsel %vm267, %v1481, 0
    %1485 = vmatprep.subr.mxu0 0.0
    %1486 = vmatpush1.msra.mxu0 0.0
    %1487 = vmatprep.subr.mxu0 0.0
    %1488 = vmatpush1.msra.mxu0 0.0
    %1489 = vmatprep.subr.mxu0 0.0
    %1490 = vmatpush1.msra.mxu0 0.0
    %1491 = vmatprep.subr.mxu0 0.0
    %1492 = vmatpush1.msra.mxu0 0.0
    %1493 = vmatprep.subr.mxu0 0.0
    %1494 = vmatpush1.msra.mxu0 0.0
    %1495 = vmatprep.subr.mxu0 0.0
    %1496 = vmatpush1.msra.mxu0 0.0
    %1497 = vmatprep.subr.mxu0 0.0
    %1498 = vmatpush1.msra.mxu0 0.0
    %1499 = vmatprep.subr.mxu0 0.0
    %1500 = vmatpush1.msra.mxu0 0.0
    %1501 = vmatprep.subr.mxu0 0.0
    %1502 = vmatpush1.msra.mxu0 0.0
    %1503 = vmatprep.subr.mxu0 0.0
    %1504 = vmatpush1.msra.mxu0 0.0
    %1505 = vmatprep.subr.mxu0 0.0
    %1506 = vmatpush1.msra.mxu0 0.0
    %1507 = vmatprep.subr.mxu0 0.0
    %1508 = vmatpush1.msra.mxu0 0.0
    %1509 = vmatprep.subr.mxu0 0.0
    %1510 = vmatpush1.msra.mxu0 %v147
    %1511 = vmatprep.subr.mxu0 0.0
    %1512 = vmatpush1.msra.mxu0 %v146
    %1513 = vmatprep.subr.mxu0 0.0
    %1514 = vmatpush1.msra.mxu0 %v145
    %1515 = vmatprep.subr.mxu0 0.0
    %1516 = vmatpush1.msra.mxu0 %v144
    %1517 = vmatprep.subr.mxu0 0.0
    %1518 = vmatpush2.msra.mxu0 0.0
    %1519 = vmatprep.subr.mxu0 0.0
    %1520 = vmatpush2.msra.mxu0 0.0
    %1521 = vmatprep.subr.mxu0 0.0
    %1522 = vmatpush2.msra.mxu0 0.0
    %1523 = vmatprep.subr.mxu0 0.0
    %1524 = vmatpush2.msra.mxu0 0.0
    %1525 = vmatprep.subr.mxu0 0.0
    %1526 = vmatpush2.msra.mxu0 0.0
    %1527 = vmatprep.subr.mxu0 0.0
    %1528 = vmatpush2.msra.mxu0 0.0
    %1529 = vmatprep.subr.mxu0 0.0
    %1530 = vmatpush2.msra.mxu0 0.0
    %1531 = vmatprep.subr.mxu0 0.0
    %1532 = vmatpush2.msra.mxu0 0.0
    %1533 = vmatprep.subr.mxu0 0.0
    %1534 = vmatpush2.msra.mxu0 0.0
    %1535 = vmatprep.subr.mxu0 0.0
    %1536 = vmatpush2.msra.mxu0 0.0
    %1537 = vmatprep.subr.mxu0 0.0
    %1538 = vmatpush2.msra.mxu0 0.0
    %1539 = vmatprep.subr.mxu0 0.0
    %1540 = vmatpush2.msra.mxu0 0.0
    %1541 = vmatprep.subr.mxu0 0.0
    %1542 = vmatpush2.msra.mxu0 0.0
    %1543 = vmatprep.subr.mxu0 0.0
    %1544 = vmatpush2.msra.mxu0 0.0
    %1545 = vmatprep.subr.mxu0 0.0
    %1546 = vmatpush2.msra.mxu0 0.0
    %1547 = vmatprep.subr.mxu0 0.0
    %1548 = vmatpush2.msra.mxu0 0.0
    %1549 = vmatprep.mubr.f32.mxu0 0.0
    %1550 = vmatmul.mubr.f32.gmra.mxu0 %v1483
    %v1551 = vpop.f32.mrf.mxu0
    %v1552 = vadd.f32 %v446, %v1551
    %v1553 = vpop.f32.mrf.mxu0
    %1554 = vdwg.mxu0
    %v1555 = vmul.f32 %v1552, %v149
    %v1556 = vmul.f32 %v1552, %v524
    %1558 = vrot.lane.b32.xlu0 %v1556, 96
    %v1559 = vpop.permute.xlu0 %1558
    %v1561 = vadd.f32 %v1555, %v1559
    %v1563 = vsel %vm173, %v1561, 0
    %1565 = vmatprep.subr.mxu0 0.0
    %1566 = vmatpush1.msra.mxu0 0.0
    %1567 = vmatprep.subr.mxu0 0.0
    %1568 = vmatpush1.msra.mxu0 0.0
    %1569 = vmatprep.subr.mxu0 0.0
    %1570 = vmatpush1.msra.mxu0 0.0
    %1571 = vmatprep.subr.mxu0 0.0
    %1572 = vmatpush1.msra.mxu0 0.0
    %1573 = vmatprep.subr.mxu0 0.0
    %1574 = vmatpush1.msra.mxu0 0.0
    %1575 = vmatprep.subr.mxu0 0.0
    %1576 = vmatpush1.msra.mxu0 0.0
    %1577 = vmatprep.subr.mxu0 0.0
    %1578 = vmatpush1.msra.mxu0 0.0
    %1579 = vmatprep.subr.mxu0 0.0
    %1580 = vmatpush1.msra.mxu0 0.0
    %1581 = vmatprep.subr.mxu0 0.0
    %1582 = vmatpush1.msra.mxu0 0.0
    %1583 = vmatprep.subr.mxu0 0.0
    %1584 = vmatpush1.msra.mxu0 0.0
    %1585 = vmatprep.subr.mxu0 0.0
    %1586 = vmatpush1.msra.mxu0 0.0
    %1587 = vmatprep.subr.mxu0 0.0
    %1588 = vmatpush1.msra.mxu0 0.0
    %1589 = vmatprep.subr.mxu0 0.0
    %1590 = vmatpush1.msra.mxu0 0.0
    %1591 = vmatprep.subr.mxu0 0.0
    %1592 = vmatpush1.msra.mxu0 0.0
    %1593 = vmatprep.subr.mxu0 0.0
    %1594 = vmatpush1.msra.mxu0 0.0
    %1595 = vmatprep.subr.mxu0 0.0
    %1596 = vmatpush1.msra.mxu0 %v1476
    %1597 = vmatprep.subr.mxu0 0.0
    %1598 = vmatpush2.msra.mxu0 0.0
    %1599 = vmatprep.subr.mxu0 0.0
    %1600 = vmatpush2.msra.mxu0 0.0
    %1601 = vmatprep.subr.mxu0 0.0
    %1602 = vmatpush2.msra.mxu0 0.0
    %1603 = vmatprep.subr.mxu0 0.0
    %1604 = vmatpush2.msra.mxu0 0.0
    %1605 = vmatprep.subr.mxu0 0.0
    %1606 = vmatpush2.msra.mxu0 0.0
    %1607 = vmatprep.subr.mxu0 0.0
    %1608 = vmatpush2.msra.mxu0 0.0
    %1609 = vmatprep.subr.mxu0 0.0
    %1610 = vmatpush2.msra.mxu0 0.0
    %1611 = vmatprep.subr.mxu0 0.0
    %1612 = vmatpush2.msra.mxu0 0.0
    %1613 = vmatprep.subr.mxu0 0.0
    %1614 = vmatpush2.msra.mxu0 0.0
    %1615 = vmatprep.subr.mxu0 0.0
    %1616 = vmatpush2.msra.mxu0 0.0
    %1617 = vmatprep.subr.mxu0 0.0
    %1618 = vmatpush2.msra.mxu0 0.0
    %1619 = vmatprep.subr.mxu0 0.0
    %1620 = vmatpush2.msra.mxu0 0.0
    %1621 = vmatprep.subr.mxu0 0.0
    %1622 = vmatpush2.msra.mxu0 0.0
    %1623 = vmatprep.subr.mxu0 0.0
    %1624 = vmatpush2.msra.mxu0 0.0
    %1625 = vmatprep.subr.mxu0 0.0
    %1626 = vmatpush2.msra.mxu0 0.0
    %1627 = vmatprep.subr.mxu0 0.0
    %1628 = vmatpush2.msra.mxu0 0.0
    %1629 = vmatprep.mubr.f32.mxu0 0.0
    %1630 = vmatmul.mubr.f32.gmra.mxu0 %v1563
    %v1631 = vpop.f32.mrf.mxu0
    %v1632 = vadd.f32 0.0, %v1631
    %v1633 = vpop.f32.mrf.mxu0
    %1634 = vdwg.mxu0
    %v1635 = vsel %vm605, %v1632, -inf
    %1636 = vmax.xlane.f32.xlu0 %v1635
    %v1637 = vpop.xlane.xlu0 %1636
    %v1638 = vsub.f32 %v1632, %v1637
    %v1639 = vmul.f32 %v1638, 1.442695
    %v1640 = vpow.pop %v1639
    %v1641 = vsel %vm605, %v1640, 0.0
    %1642 = vadd.xlane.f32.xlu0 %v1641
    %v1643 = vpop.xlane.xlu0 %1642
    %v1644 = vrcp.pop %v1643
    %v1645 = vmul.f32 %v1640, %v1644
    %v1647 = vsel %vm605, %v1450, 0
    %v1650 = vsel %vm605, %v1645, 0
    %1652 = vmatprep.subr.mxu0 0.0
    %1653 = vmatpush1.xpose.msra.mxu0 0.0
    %1654 = vmatprep.subr.mxu0 0.0
    %1655 = vmatpush1.xpose.msra.mxu0 0.0
    %1656 = vmatprep.subr.mxu0 0.0
    %1657 = vmatpush1.xpose.msra.mxu0 0.0
    %1658 = vmatprep.subr.mxu0 0.0
    %1659 = vmatpush1.xpose.msra.mxu0 0.0
    %1660 = vmatprep.subr.mxu0 0.0
    %1661 = vmatpush1.xpose.msra.mxu0 0.0
    %1662 = vmatprep.subr.mxu0 0.0
    %1663 = vmatpush1.xpose.msra.mxu0 0.0
    %1664 = vmatprep.subr.mxu0 0.0
    %1665 = vmatpush1.xpose.msra.mxu0 0.0
    %1666 = vmatprep.subr.mxu0 0.0
    %1667 = vmatpush1.xpose.msra.mxu0 0.0
    %1668 = vmatprep.subr.mxu0 0.0
    %1669 = vmatpush1.xpose.msra.mxu0 0.0
    %1670 = vmatprep.subr.mxu0 0.0
    %1671 = vmatpush1.xpose.msra.mxu0 0.0
    %1672 = vmatprep.subr.mxu0 0.0
    %1673 = vmatpush1.xpose.msra.mxu0 0.0
    %1674 = vmatprep.subr.mxu0 0.0
    %1675 = vmatpush1.xpose.msra.mxu0 0.0
    %1676 = vmatprep.subr.mxu0 0.0
    %1677 = vmatpush1.xpose.msra.mxu0 0.0
    %1678 = vmatprep.subr.mxu0 0.0
    %1679 = vmatpush1.xpose.msra.mxu0 0.0
    %1680 = vmatprep.subr.mxu0 0.0
    %1681 = vmatpush1.xpose.msra.mxu0 0.0
    %1682 = vmatprep.subr.mxu0 0.0
    %1683 = vmatpush1.xpose.msra.mxu0 %v1650
    %1684 = vmatprep.subr.mxu0 0.0
    %1685 = vmatpush2.xpose.msra.mxu0 0.0
    %1686 = vmatprep.subr.mxu0 0.0
    %1687 = vmatpush2.xpose.msra.mxu0 0.0
    %1688 = vmatprep.subr.mxu0 0.0
    %1689 = vmatpush2.xpose.msra.mxu0 0.0
    %1690 = vmatprep.subr.mxu0 0.0
    %1691 = vmatpush2.xpose.msra.mxu0 0.0
    %1692 = vmatprep.subr.mxu0 0.0
    %1693 = vmatpush2.xpose.msra.mxu0 0.0
    %1694 = vmatprep.subr.mxu0 0.0
    %1695 = vmatpush2.xpose.msra.mxu0 0.0
    %1696 = vmatprep.subr.mxu0 0.0
    %1697 = vmatpush2.xpose.msra.mxu0 0.0
    %1698 = vmatprep.subr.mxu0 0.0
    %1699 = vmatpush2.xpose.msra.mxu0 0.0
    %1700 = vmatprep.subr.mxu0 0.0
    %1701 = vmatpush2.xpose.msra.mxu0 0.0
    %1702 = vmatprep.subr.mxu0 0.0
    %1703 = vmatpush2.xpose.msra.mxu0 0.0
    %1704 = vmatprep.subr.mxu0 0.0
    %1705 = vmatpush2.xpose.msra.mxu0 0.0
    %1706 = vmatprep.subr.mxu0 0.0
    %1707 = vmatpush2.xpose.msra.mxu0 0.0
    %1708 = vmatprep.subr.mxu0 0.0
    %1709 = vmatpush2.xpose.msra.mxu0 0.0
    %1710 = vmatprep.subr.mxu0 0.0
    %1711 = vmatpush2.xpose.msra.mxu0 0.0
    %1712 = vmatprep.subr.mxu0 0.0
    %1713 = vmatpush2.xpose.msra.mxu0 0.0
    %1714 = vmatprep.subr.mxu0 0.0
    %1715 = vmatpush2.xpose.msra.mxu0 0.0
    %1716 = vmatprep.mubr.f32.mxu0 0.0
    %1717 = vmatmul.mubr.f32.gmra.mxu0 %v1647
    %v1718 = vpop.f32.mrf.mxu0
    %v1719 = vadd.f32 0.0, %v1718
    %v1720 = vpop.f32.mrf.mxu0
    %1721 = vdwg.mxu0
    %1722 = vst.msk [vmem:[#allocation3] sm:$0xff] %vm173, %v1719
    %1723 = vrot.lane.b32.xlu0 %v1561, 120
    %v1724 = vpop.permute.xlu0 %1723
    %v1725 = vsel %vm173, %v1724, 0
    %1727 = vmatprep.subr.mxu0 0.0
    %1728 = vmatpush1.msra.mxu0 0.0
    %1729 = vmatprep.subr.mxu0 0.0
    %1730 = vmatpush1.msra.mxu0 0.0
    %1731 = vmatprep.subr.mxu0 0.0
    %1732 = vmatpush1.msra.mxu0 0.0
    %1733 = vmatprep.subr.mxu0 0.0
    %1734 = vmatpush1.msra.mxu0 0.0
    %1735 = vmatprep.subr.mxu0 0.0
    %1736 = vmatpush1.msra.mxu0 0.0
    %1737 = vmatprep.subr.mxu0 0.0
    %1738 = vmatpush1.msra.mxu0 0.0
    %1739 = vmatprep.subr.mxu0 0.0
    %1740 = vmatpush1.msra.mxu0 0.0
    %1741 = vmatprep.subr.mxu0 0.0
    %1742 = vmatpush1.msra.mxu0 0.0
    %1743 = vmatprep.subr.mxu0 0.0
    %1744 = vmatpush1.msra.mxu0 0.0
    %1745 = vmatprep.subr.mxu0 0.0
    %1746 = vmatpush1.msra.mxu0 0.0
    %1747 = vmatprep.subr.mxu0 0.0
    %1748 = vmatpush1.msra.mxu0 0.0
    %1749 = vmatprep.subr.mxu0 0.0
    %1750 = vmatpush1.msra.mxu0 0.0
    %1751 = vmatprep.subr.mxu0 0.0
    %1752 = vmatpush1.msra.mxu0 0.0
    %1753 = vmatprep.subr.mxu0 0.0
    %1754 = vmatpush1.msra.mxu0 0.0
    %1755 = vmatprep.subr.mxu0 0.0
    %1756 = vmatpush1.msra.mxu0 0.0
    %1757 = vmatprep.subr.mxu0 0.0
    %1758 = vmatpush1.msra.mxu0 %v1477
    %1759 = vmatprep.subr.mxu0 0.0
    %1760 = vmatpush2.msra.mxu0 0.0
    %1761 = vmatprep.subr.mxu0 0.0
    %1762 = vmatpush2.msra.mxu0 0.0
    %1763 = vmatprep.subr.mxu0 0.0
    %1764 = vmatpush2.msra.mxu0 0.0
    %1765 = vmatprep.subr.mxu0 0.0
    %1766 = vmatpush2.msra.mxu0 0.0
    %1767 = vmatprep.subr.mxu0 0.0
    %1768 = vmatpush2.msra.mxu0 0.0
    %1769 = vmatprep.subr.mxu0 0.0
    %1770 = vmatpush2.msra.mxu0 0.0
    %1771 = vmatprep.subr.mxu0 0.0
    %1772 = vmatpush2.msra.mxu0 0.0
    %1773 = vmatprep.subr.mxu0 0.0
    %1774 = vmatpush2.msra.mxu0 0.0
    %1775 = vmatprep.subr.mxu0 0.0
    %1776 = vmatpush2.msra.mxu0 0.0
    %1777 = vmatprep.subr.mxu0 0.0
    %1778 = vmatpush2.msra.mxu0 0.0
    %1779 = vmatprep.subr.mxu0 0.0
    %1780 = vmatpush2.msra.mxu0 0.0
    %1781 = vmatprep.subr.mxu0 0.0
    %1782 = vmatpush2.msra.mxu0 0.0
    %1783 = vmatprep.subr.mxu0 0.0
    %1784 = vmatpush2.msra.mxu0 0.0
    %1785 = vmatprep.subr.mxu0 0.0
    %1786 = vmatpush2.msra.mxu0 0.0
    %1787 = vmatprep.subr.mxu0 0.0
    %1788 = vmatpush2.msra.mxu0 0.0
    %1789 = vmatprep.subr.mxu0 0.0
    %1790 = vmatpush2.msra.mxu0 0.0
    %1791 = vmatprep.mubr.f32.mxu0 0.0
    %1792 = vmatmul.mubr.f32.gmra.mxu0 %v1725
    %v1793 = vpop.f32.mrf.mxu0
    %v1794 = vadd.f32 0.0, %v1793
    %v1795 = vpop.f32.mrf.mxu0
    %1796 = vdwg.mxu0
    %v1797 = vsel %vm605, %v1794, -inf
    %1798 = vmax.xlane.f32.xlu0 %v1797
    %v1799 = vpop.xlane.xlu0 %1798
    %v1800 = vsub.f32 %v1794, %v1799
    %v1801 = vmul.f32 %v1800, 1.442695
    %v1802 = vpow.pop %v1801
    %v1803 = vsel %vm605, %v1802, 0.0
    %1804 = vadd.xlane.f32.xlu0 %v1803
    %v1805 = vpop.xlane.xlu0 %1804
    %v1806 = vrcp.pop %v1805
    %v1807 = vmul.f32 %v1802, %v1806
    %v1809 = vsel %vm605, %v1455, 0
    %v1812 = vsel %vm605, %v1807, 0
    %1814 = vmatprep.subr.mxu0 0.0
    %1815 = vmatpush1.xpose.msra.mxu0 0.0
    %1816 = vmatprep.subr.mxu0 0.0
    %1817 = vmatpush1.xpose.msra.mxu0 0.0
    %1818 = vmatprep.subr.mxu0 0.0
    %1819 = vmatpush1.xpose.msra.mxu0 0.0
    %1820 = vmatprep.subr.mxu0 0.0
    %1821 = vmatpush1.xpose.msra.mxu0 0.0
    %1822 = vmatprep.subr.mxu0 0.0
    %1823 = vmatpush1.xpose.msra.mxu0 0.0
    %1824 = vmatprep.subr.mxu0 0.0
    %1825 = vmatpush1.xpose.msra.mxu0 0.0
    %1826 = vmatprep.subr.mxu0 0.0
    %1827 = vmatpush1.xpose.msra.mxu0 0.0
    %1828 = vmatprep.subr.mxu0 0.0
    %1829 = vmatpush1.xpose.msra.mxu0 0.0
    %1830 = vmatprep.subr.mxu0 0.0
    %1831 = vmatpush1.xpose.msra.mxu0 0.0
    %1832 = vmatprep.subr.mxu0 0.0
    %1833 = vmatpush1.xpose.msra.mxu0 0.0
    %1834 = vmatprep.subr.mxu0 0.0
    %1835 = vmatpush1.xpose.msra.mxu0 0.0
    %1836 = vmatprep.subr.mxu0 0.0
    %1837 = vmatpush1.xpose.msra.mxu0 0.0
    %1838 = vmatprep.subr.mxu0 0.0
    %1839 = vmatpush1.xpose.msra.mxu0 0.0
    %1840 = vmatprep.subr.mxu0 0.0
    %1841 = vmatpush1.xpose.msra.mxu0 0.0
    %1842 = vmatprep.subr.mxu0 0.0
    %1843 = vmatpush1.xpose.msra.mxu0 0.0
    %1844 = vmatprep.subr.mxu0 0.0
    %1845 = vmatpush1.xpose.msra.mxu0 %v1812
    %1846 = vmatprep.subr.mxu0 0.0
    %1847 = vmatpush2.xpose.msra.mxu0 0.0
    %1848 = vmatprep.subr.mxu0 0.0
    %1849 = vmatpush2.xpose.msra.mxu0 0.0
    %1850 = vmatprep.subr.mxu0 0.0
    %1851 = vmatpush2.xpose.msra.mxu0 0.0
    %1852 = vmatprep.subr.mxu0 0.0
    %1853 = vmatpush2.xpose.msra.mxu0 0.0
    %1854 = vmatprep.subr.mxu0 0.0
    %1855 = vmatpush2.xpose.msra.mxu0 0.0
    %1856 = vmatprep.subr.mxu0 0.0
    %1857 = vmatpush2.xpose.msra.mxu0 0.0
    %1858 = vmatprep.subr.mxu0 0.0
    %1859 = vmatpush2.xpose.msra.mxu0 0.0
    %1860 = vmatprep.subr.mxu0 0.0
    %1861 = vmatpush2.xpose.msra.mxu0 0.0
    %1862 = vmatprep.subr.mxu0 0.0
    %1863 = vmatpush2.xpose.msra.mxu0 0.0
    %1864 = vmatprep.subr.mxu0 0.0
    %1865 = vmatpush2.xpose.msra.mxu0 0.0
    %1866 = vmatprep.subr.mxu0 0.0
    %1867 = vmatpush2.xpose.msra.mxu0 0.0
    %1868 = vmatprep.subr.mxu0 0.0
    %1869 = vmatpush2.xpose.msra.mxu0 0.0
    %1870 = vmatprep.subr.mxu0 0.0
    %1871 = vmatpush2.xpose.msra.mxu0 0.0
    %1872 = vmatprep.subr.mxu0 0.0
    %1873 = vmatpush2.xpose.msra.mxu0 0.0
    %1874 = vmatprep.subr.mxu0 0.0
    %1875 = vmatpush2.xpose.msra.mxu0 0.0
    %1876 = vmatprep.subr.mxu0 0.0
    %1877 = vmatpush2.xpose.msra.mxu0 0.0
    %1878 = vmatprep.mubr.f32.mxu0 0.0
    %1879 = vmatmul.mubr.f32.gmra.mxu0 %v1809
    %v1880 = vpop.f32.mrf.mxu0
    %v1881 = vadd.f32 0.0, %v1880
    %v1882 = vpop.f32.mrf.mxu0
    %1883 = vdwg.mxu0
    %1884 = vst.msk [vmem:[#allocation3 + $0x8] sm:$0xff] %vm173, %v1881
    %1885 = vrot.lane.b32.xlu0 %v1561, 112
    %v1886 = vpop.permute.xlu0 %1885
    %v1887 = vsel %vm173, %v1886, 0
    %1889 = vmatprep.subr.mxu0 0.0
    %1890 = vmatpush1.msra.mxu0 0.0
    %1891 = vmatprep.subr.mxu0 0.0
    %1892 = vmatpush1.msra.mxu0 0.0
    %1893 = vmatprep.subr.mxu0 0.0
    %1894 = vmatpush1.msra.mxu0 0.0
    %1895 = vmatprep.subr.mxu0 0.0
    %1896 = vmatpush1.msra.mxu0 0.0
    %1897 = vmatprep.subr.mxu0 0.0
    %1898 = vmatpush1.msra.mxu0 0.0
    %1899 = vmatprep.subr.mxu0 0.0
    %1900 = vmatpush1.msra.mxu0 0.0
    %1901 = vmatprep.subr.mxu0 0.0
    %1902 = vmatpush1.msra.mxu0 0.0
    %1903 = vmatprep.subr.mxu0 0.0
    %1904 = vmatpush1.msra.mxu0 0.0
    %1905 = vmatprep.subr.mxu0 0.0
    %1906 = vmatpush1.msra.mxu0 0.0
    %1907 = vmatprep.subr.mxu0 0.0
    %1908 = vmatpush1.msra.mxu0 0.0
    %1909 = vmatprep.subr.mxu0 0.0
    %1910 = vmatpush1.msra.mxu0 0.0
    %1911 = vmatprep.subr.mxu0 0.0
    %1912 = vmatpush1.msra.mxu0 0.0
    %1913 = vmatprep.subr.mxu0 0.0
    %1914 = vmatpush1.msra.mxu0 0.0
    %1915 = vmatprep.subr.mxu0 0.0
    %1916 = vmatpush1.msra.mxu0 0.0
    %1917 = vmatprep.subr.mxu0 0.0
    %1918 = vmatpush1.msra.mxu0 0.0
    %1919 = vmatprep.subr.mxu0 0.0
    %1920 = vmatpush1.msra.mxu0 %v1478
    %1921 = vmatprep.subr.mxu0 0.0
    %1922 = vmatpush2.msra.mxu0 0.0
    %1923 = vmatprep.subr.mxu0 0.0
    %1924 = vmatpush2.msra.mxu0 0.0
    %1925 = vmatprep.subr.mxu0 0.0
    %1926 = vmatpush2.msra.mxu0 0.0
    %1927 = vmatprep.subr.mxu0 0.0
    %1928 = vmatpush2.msra.mxu0 0.0
    %1929 = vmatprep.subr.mxu0 0.0
    %1930 = vmatpush2.msra.mxu0 0.0
    %1931 = vmatprep.subr.mxu0 0.0
    %1932 = vmatpush2.msra.mxu0 0.0
    %1933 = vmatprep.subr.mxu0 0.0
    %1934 = vmatpush2.msra.mxu0 0.0
    %1935 = vmatprep.subr.mxu0 0.0
    %1936 = vmatpush2.msra.mxu0 0.0
    %1937 = vmatprep.subr.mxu0 0.0
    %1938 = vmatpush2.msra.mxu0 0.0
    %1939 = vmatprep.subr.mxu0 0.0
    %1940 = vmatpush2.msra.mxu0 0.0
    %1941 = vmatprep.subr.mxu0 0.0
    %1942 = vmatpush2.msra.mxu0 0.0
    %1943 = vmatprep.subr.mxu0 0.0
    %1944 = vmatpush2.msra.mxu0 0.0
    %1945 = vmatprep.subr.mxu0 0.0
    %1946 = vmatpush2.msra.mxu0 0.0
    %1947 = vmatprep.subr.mxu0 0.0
    %1948 = vmatpush2.msra.mxu0 0.0
    %1949 = vmatprep.subr.mxu0 0.0
    %1950 = vmatpush2.msra.mxu0 0.0
    %1951 = vmatprep.subr.mxu0 0.0
    %1952 = vmatpush2.msra.mxu0 0.0
    %1953 = vmatprep.mubr.f32.mxu0 0.0
    %1954 = vmatmul.mubr.f32.gmra.mxu0 %v1887
    %v1955 = vpop.f32.mrf.mxu0
    %v1956 = vadd.f32 0.0, %v1955
    %v1957 = vpop.f32.mrf.mxu0
    %1958 = vdwg.mxu0
    %v1959 = vsel %vm605, %v1956, -inf
    %1960 = vmax.xlane.f32.xlu0 %v1959
    %v1961 = vpop.xlane.xlu0 %1960
    %v1962 = vsub.f32 %v1956, %v1961
    %v1963 = vmul.f32 %v1962, 1.442695
    %v1964 = vpow.pop %v1963
    %v1965 = vsel %vm605, %v1964, 0.0
    %1966 = vadd.xlane.f32.xlu0 %v1965
    %v1967 = vpop.xlane.xlu0 %1966
    %v1968 = vrcp.pop %v1967
    %v1969 = vmul.f32 %v1964, %v1968
    %v1971 = vsel %vm605, %v1460, 0
    %v1974 = vsel %vm605, %v1969, 0
    %1976 = vmatprep.subr.mxu0 0.0
    %1977 = vmatpush1.xpose.msra.mxu0 0.0
    %1978 = vmatprep.subr.mxu0 0.0
    %1979 = vmatpush1.xpose.msra.mxu0 0.0
    %1980 = vmatprep.subr.mxu0 0.0
    %1981 = vmatpush1.xpose.msra.mxu0 0.0
    %1982 = vmatprep.subr.mxu0 0.0
    %1983 = vmatpush1.xpose.msra.mxu0 0.0
    %1984 = vmatprep.subr.mxu0 0.0
    %1985 = vmatpush1.xpose.msra.mxu0 0.0
    %1986 = vmatprep.subr.mxu0 0.0
    %1987 = vmatpush1.xpose.msra.mxu0 0.0
    %1988 = vmatprep.subr.mxu0 0.0
    %1989 = vmatpush1.xpose.msra.mxu0 0.0
    %1990 = vmatprep.subr.mxu0 0.0
    %1991 = vmatpush1.xpose.msra.mxu0 0.0
    %1992 = vmatprep.subr.mxu0 0.0
    %1993 = vmatpush1.xpose.msra.mxu0 0.0
    %1994 = vmatprep.subr.mxu0 0.0
    %1995 = vmatpush1.xpose.msra.mxu0 0.0
    %1996 = vmatprep.subr.mxu0 0.0
    %1997 = vmatpush1.xpose.msra.mxu0 0.0
    %1998 = vmatprep.subr.mxu0 0.0
    %1999 = vmatpush1.xpose.msra.mxu0 0.0
    %2000 = vmatprep.subr.mxu0 0.0
    %2001 = vmatpush1.xpose.msra.mxu0 0.0
    %2002 = vmatprep.subr.mxu0 0.0
    %2003 = vmatpush1.xpose.msra.mxu0 0.0
    %2004 = vmatprep.subr.mxu0 0.0
    %2005 = vmatpush1.xpose.msra.mxu0 0.0
    %2006 = vmatprep.subr.mxu0 0.0
    %2007 = vmatpush1.xpose.msra.mxu0 %v1974
    %2008 = vmatprep.subr.mxu0 0.0
    %2009 = vmatpush2.xpose.msra.mxu0 0.0
    %2010 = vmatprep.subr.mxu0 0.0
    %2011 = vmatpush2.xpose.msra.mxu0 0.0
    %2012 = vmatprep.subr.mxu0 0.0
    %2013 = vmatpush2.xpose.msra.mxu0 0.0
    %2014 = vmatprep.subr.mxu0 0.0
    %2015 = vmatpush2.xpose.msra.mxu0 0.0
    %2016 = vmatprep.subr.mxu0 0.0
    %2017 = vmatpush2.xpose.msra.mxu0 0.0
    %2018 = vmatprep.subr.mxu0 0.0
    %2019 = vmatpush2.xpose.msra.mxu0 0.0
    %2020 = vmatprep.subr.mxu0 0.0
    %2021 = vmatpush2.xpose.msra.mxu0 0.0
    %2022 = vmatprep.subr.mxu0 0.0
    %2023 = vmatpush2.xpose.msra.mxu0 0.0
    %2024 = vmatprep.subr.mxu0 0.0
    %2025 = vmatpush2.xpose.msra.mxu0 0.0
    %2026 = vmatprep.subr.mxu0 0.0
    %2027 = vmatpush2.xpose.msra.mxu0 0.0
    %2028 = vmatprep.subr.mxu0 0.0
    %2029 = vmatpush2.xpose.msra.mxu0 0.0
    %2030 = vmatprep.subr.mxu0 0.0
    %2031 = vmatpush2.xpose.msra.mxu0 0.0
    %2032 = vmatprep.subr.mxu0 0.0
    %2033 = vmatpush2.xpose.msra.mxu0 0.0
    %2034 = vmatprep.subr.mxu0 0.0
    %2035 = vmatpush2.xpose.msra.mxu0 0.0
    %2036 = vmatprep.subr.mxu0 0.0
    %2037 = vmatpush2.xpose.msra.mxu0 0.0
    %2038 = vmatprep.subr.mxu0 0.0
    %2039 = vmatpush2.xpose.msra.mxu0 0.0
    %2040 = vmatprep.mubr.f32.mxu0 0.0
    %2041 = vmatmul.mubr.f32.gmra.mxu0 %v1971
    %v2042 = vpop.f32.mrf.mxu0
    %v2043 = vadd.f32 0.0, %v2042
    %v2044 = vpop.f32.mrf.mxu0
    %2045 = vdwg.mxu0
    %2046 = vst.msk [vmem:[#allocation3 + $0x10] sm:$0xff] %vm173, %v2043
    %2047 = vrot.lane.b32.xlu0 %v1561, 104
    %v2048 = vpop.permute.xlu0 %2047
    %v2049 = vsel %vm173, %v2048, 0
    %2051 = vmatprep.subr.mxu0 0.0
    %2052 = vmatpush1.msra.mxu0 0.0
    %2053 = vmatprep.subr.mxu0 0.0
    %2054 = vmatpush1.msra.mxu0 0.0
    %2055 = vmatprep.subr.mxu0 0.0
    %2056 = vmatpush1.msra.mxu0 0.0
    %2057 = vmatprep.subr.mxu0 0.0
    %2058 = vmatpush1.msra.mxu0 0.0
    %2059 = vmatprep.subr.mxu0 0.0
    %2060 = vmatpush1.msra.mxu0 0.0
    %2061 = vmatprep.subr.mxu0 0.0
    %2062 = vmatpush1.msra.mxu0 0.0
    %2063 = vmatprep.subr.mxu0 0.0
    %2064 = vmatpush1.msra.mxu0 0.0
    %2065 = vmatprep.subr.mxu0 0.0
    %2066 = vmatpush1.msra.mxu0 0.0
    %2067 = vmatprep.subr.mxu0 0.0
    %2068 = vmatpush1.msra.mxu0 0.0
    %2069 = vmatprep.subr.mxu0 0.0
    %2070 = vmatpush1.msra.mxu0 0.0
    %2071 = vmatprep.subr.mxu0 0.0
    %2072 = vmatpush1.msra.mxu0 0.0
    %2073 = vmatprep.subr.mxu0 0.0
    %2074 = vmatpush1.msra.mxu0 0.0
    %2075 = vmatprep.subr.mxu0 0.0
    %2076 = vmatpush1.msra.mxu0 0.0
    %2077 = vmatprep.subr.mxu0 0.0
    %2078 = vmatpush1.msra.mxu0 0.0
    %2079 = vmatprep.subr.mxu0 0.0
    %2080 = vmatpush1.msra.mxu0 0.0
    %2081 = vmatprep.subr.mxu0 0.0
    %2082 = vmatpush1.msra.mxu0 %v1479
    %2083 = vmatprep.subr.mxu0 0.0
    %2084 = vmatpush2.msra.mxu0 0.0
    %2085 = vmatprep.subr.mxu0 0.0
    %2086 = vmatpush2.msra.mxu0 0.0
    %2087 = vmatprep.subr.mxu0 0.0
    %2088 = vmatpush2.msra.mxu0 0.0
    %2089 = vmatprep.subr.mxu0 0.0
    %2090 = vmatpush2.msra.mxu0 0.0
    %2091 = vmatprep.subr.mxu0 0.0
    %2092 = vmatpush2.msra.mxu0 0.0
    %2093 = vmatprep.subr.mxu0 0.0
    %2094 = vmatpush2.msra.mxu0 0.0
    %2095 = vmatprep.subr.mxu0 0.0
    %2096 = vmatpush2.msra.mxu0 0.0
    %2097 = vmatprep.subr.mxu0 0.0
    %2098 = vmatpush2.msra.mxu0 0.0
    %2099 = vmatprep.subr.mxu0 0.0
    %2100 = vmatpush2.msra.mxu0 0.0
    %2101 = vmatprep.subr.mxu0 0.0
    %2102 = vmatpush2.msra.mxu0 0.0
    %2103 = vmatprep.subr.mxu0 0.0
    %2104 = vmatpush2.msra.mxu0 0.0
    %2105 = vmatprep.subr.mxu0 0.0
    %2106 = vmatpush2.msra.mxu0 0.0
    %2107 = vmatprep.subr.mxu0 0.0
    %2108 = vmatpush2.msra.mxu0 0.0
    %2109 = vmatprep.subr.mxu0 0.0
    %2110 = vmatpush2.msra.mxu0 0.0
    %2111 = vmatprep.subr.mxu0 0.0
    %2112 = vmatpush2.msra.mxu0 0.0
    %2113 = vmatprep.subr.mxu0 0.0
    %2114 = vmatpush2.msra.mxu0 0.0
    %2115 = vmatprep.mubr.f32.mxu0 0.0
    %2116 = vmatmul.mubr.f32.gmra.mxu0 %v2049
    %v2117 = vpop.f32.mrf.mxu0
    %v2118 = vadd.f32 0.0, %v2117
    %v2119 = vpop.f32.mrf.mxu0
    %2120 = vdwg.mxu0
    %v2121 = vsel %vm605, %v2118, -inf
    %2122 = vmax.xlane.f32.xlu0 %v2121
    %v2123 = vpop.xlane.xlu0 %2122
    %v2124 = vsub.f32 %v2118, %v2123
    %v2125 = vmul.f32 %v2124, 1.442695
    %v2126 = vpow.pop %v2125
    %v2127 = vsel %vm605, %v2126, 0.0
    %2128 = vadd.xlane.f32.xlu0 %v2127
    %v2129 = vpop.xlane.xlu0 %2128
    %v2130 = vrcp.pop %v2129
    %v2131 = vmul.f32 %v2126, %v2130
    %v2133 = vsel %vm605, %v1465, 0
    %v2136 = vsel %vm605, %v2131, 0
    %2138 = vmatprep.subr.mxu0 0.0
    %2139 = vmatpush1.xpose.msra.mxu0 0.0
    %2140 = vmatprep.subr.mxu0 0.0
    %2141 = vmatpush1.xpose.msra.mxu0 0.0
    %2142 = vmatprep.subr.mxu0 0.0
    %2143 = vmatpush1.xpose.msra.mxu0 0.0
    %2144 = vmatprep.subr.mxu0 0.0
    %2145 = vmatpush1.xpose.msra.mxu0 0.0
    %2146 = vmatprep.subr.mxu0 0.0
    %2147 = vmatpush1.xpose.msra.mxu0 0.0
    %2148 = vmatprep.subr.mxu0 0.0
    %2149 = vmatpush1.xpose.msra.mxu0 0.0
    %2150 = vmatprep.subr.mxu0 0.0
    %2151 = vmatpush1.xpose.msra.mxu0 0.0
    %2152 = vmatprep.subr.mxu0 0.0
    %2153 = vmatpush1.xpose.msra.mxu0 0.0
    %2154 = vmatprep.subr.mxu0 0.0
    %2155 = vmatpush1.xpose.msra.mxu0 0.0
    %2156 = vmatprep.subr.mxu0 0.0
    %2157 = vmatpush1.xpose.msra.mxu0 0.0
    %2158 = vmatprep.subr.mxu0 0.0
    %2159 = vmatpush1.xpose.msra.mxu0 0.0
    %2160 = vmatprep.subr.mxu0 0.0
    %2161 = vmatpush1.xpose.msra.mxu0 0.0
    %2162 = vmatprep.subr.mxu0 0.0
    %2163 = vmatpush1.xpose.msra.mxu0 0.0
    %2164 = vmatprep.subr.mxu0 0.0
    %2165 = vmatpush1.xpose.msra.mxu0 0.0
    %2166 = vmatprep.subr.mxu0 0.0
    %2167 = vmatpush1.xpose.msra.mxu0 0.0
    %2168 = vmatprep.subr.mxu0 0.0
    %2169 = vmatpush1.xpose.msra.mxu0 %v2136
    %2170 = vmatprep.subr.mxu0 0.0
    %2171 = vmatpush2.xpose.msra.mxu0 0.0
    %2172 = vmatprep.subr.mxu0 0.0
    %2173 = vmatpush2.xpose.msra.mxu0 0.0
    %2174 = vmatprep.subr.mxu0 0.0
    %2175 = vmatpush2.xpose.msra.mxu0 0.0
    %2176 = vmatprep.subr.mxu0 0.0
    %2177 = vmatpush2.xpose.msra.mxu0 0.0
    %2178 = vmatprep.subr.mxu0 0.0
    %2179 = vmatpush2.xpose.msra.mxu0 0.0
    %2180 = vmatprep.subr.mxu0 0.0
    %2181 = vmatpush2.xpose.msra.mxu0 0.0
    %2182 = vmatprep.subr.mxu0 0.0
    %2183 = vmatpush2.xpose.msra.mxu0 0.0
    %2184 = vmatprep.subr.mxu0 0.0
    %2185 = vmatpush2.xpose.msra.mxu0 0.0
    %2186 = vmatprep.subr.mxu0 0.0
    %2187 = vmatpush2.xpose.msra.mxu0 0.0
    %2188 = vmatprep.subr.mxu0 0.0
    %2189 = vmatpush2.xpose.msra.mxu0 0.0
    %2190 = vmatprep.subr.mxu0 0.0
    %2191 = vmatpush2.xpose.msra.mxu0 0.0
    %2192 = vmatprep.subr.mxu0 0.0
    %2193 = vmatpush2.xpose.msra.mxu0 0.0
    %2194 = vmatprep.subr.mxu0 0.0
    %2195 = vmatpush2.xpose.msra.mxu0 0.0
    %2196 = vmatprep.subr.mxu0 0.0
    %2197 = vmatpush2.xpose.msra.mxu0 0.0
    %2198 = vmatprep.subr.mxu0 0.0
    %2199 = vmatpush2.xpose.msra.mxu0 0.0
    %2200 = vmatprep.subr.mxu0 0.0
    %2201 = vmatpush2.xpose.msra.mxu0 0.0
    %2202 = vmatprep.mubr.f32.mxu0 0.0
    %2203 = vmatmul.mubr.f32.gmra.mxu0 %v2133
    %v2204 = vpop.f32.mrf.mxu0
    %v2205 = vadd.f32 0.0, %v2204
    %v2206 = vpop.f32.mrf.mxu0
    %2207 = vdwg.mxu0
    %2208 = vst.msk [vmem:[#allocation3 + $0x18] sm:$0xff] %vm173, %v2205
    %v2209 = vld [vmem:[#allocation3] sm:$0xff]
    %v2210 = vld [vmem:[#allocation3 + $0x8] sm:$0xff]
    %v2211 = vld [vmem:[#allocation3 + $0x10] sm:$0xff]
    %v2212 = vld [vmem:[#allocation3 + $0x18] sm:$0xff]
    %2213 = vmatprep.subr.mxu0 0.0
    %2214 = vmatpush1.msra.mxu0 0.0
    %2215 = vmatprep.subr.mxu0 0.0
    %2216 = vmatpush1.msra.mxu0 0.0
    %2217 = vmatprep.subr.mxu0 0.0
    %2218 = vmatpush1.msra.mxu0 0.0
    %2219 = vmatprep.subr.mxu0 0.0
    %2220 = vmatpush1.msra.mxu0 0.0
    %2221 = vmatprep.subr.mxu0 0.0
    %2222 = vmatpush1.msra.mxu0 0.0
    %2223 = vmatprep.subr.mxu0 0.0
    %2224 = vmatpush1.msra.mxu0 0.0
    %2225 = vmatprep.subr.mxu0 0.0
    %2226 = vmatpush1.msra.mxu0 0.0
    %2227 = vmatprep.subr.mxu0 0.0
    %2228 = vmatpush1.msra.mxu0 0.0
    %2229 = vmatprep.subr.mxu0 0.0
    %2230 = vmatpush1.msra.mxu0 0.0
    %2231 = vmatprep.subr.mxu0 0.0
    %2232 = vmatpush1.msra.mxu0 0.0
    %2233 = vmatprep.subr.mxu0 0.0
    %2234 = vmatpush1.msra.mxu0 0.0
    %2235 = vmatprep.subr.mxu0 0.0
    %2236 = vmatpush1.msra.mxu0 0.0
    %2237 = vmatprep.subr.mxu0 0.0
    %2238 = vmatpush1.msra.mxu0 %v2212
    %2239 = vmatprep.subr.mxu0 0.0
    %2240 = vmatpush1.msra.mxu0 %v2211
    %2241 = vmatprep.subr.mxu0 0.0
    %2242 = vmatpush1.msra.mxu0 %v2210
    %2243 = vmatprep.subr.mxu0 0.0
    %2244 = vmatpush1.msra.mxu0 %v2209
    %2245 = vmatprep.subr.mxu0 0.0
    %2246 = vmatpush2.msra.mxu0 0.0
    %2247 = vmatprep.subr.mxu0 0.0
    %2248 = vmatpush2.msra.mxu0 0.0
    %2249 = vmatprep.subr.mxu0 0.0
    %2250 = vmatpush2.msra.mxu0 0.0
    %2251 = vmatprep.subr.mxu0 0.0
    %2252 = vmatpush2.msra.mxu0 0.0
    %2253 = vmatprep.subr.mxu0 0.0
    %2254 = vmatpush2.msra.mxu0 0.0
    %2255 = vmatprep.subr.mxu0 0.0
    %2256 = vmatpush2.msra.mxu0 0.0
    %2257 = vmatprep.subr.mxu0 0.0
    %2258 = vmatpush2.msra.mxu0 0.0
    %2259 = vmatprep.subr.mxu0 0.0
    %2260 = vmatpush2.msra.mxu0 0.0
    %2261 = vmatprep.subr.mxu0 0.0
    %2262 = vmatpush2.msra.mxu0 0.0
    %2263 = vmatprep.subr.mxu0 0.0
    %2264 = vmatpush2.msra.mxu0 0.0
    %2265 = vmatprep.subr.mxu0 0.0
    %2266 = vmatpush2.msra.mxu0 0.0
    %2267 = vmatprep.subr.mxu0 0.0
    %2268 = vmatpush2.msra.mxu0 0.0
    %2269 = vmatprep.subr.mxu0 0.0
    %2270 = vmatpush2.msra.mxu0 0.0
    %2271 = vmatprep.subr.mxu0 0.0
    %2272 = vmatpush2.msra.mxu0 0.0
    %2273 = vmatprep.subr.mxu0 0.0
    %2274 = vmatpush2.msra.mxu0 0.0
    %2275 = vmatprep.subr.mxu0 0.0
    %2276 = vmatpush2.msra.mxu0 0.0
    %2277 = vmatprep.mubr.f32.mxu0 0.0
    %2278 = vmatmul.mubr.f32.gmra.mxu0 %v1205
    %v2279 = vpop.f32.mrf.mxu0
    %v2280 = vadd.f32 %v1187, %v2279
    %v2281 = vpop.f32.mrf.mxu0
    %2282 = vmatprep.mubr.f32.mxu0 0.0
    %2283 = vmatmul.mubr.f32.gmra.mxu0 %v1208
    %v2284 = vpop.f32.mrf.mxu0
    %v2285 = vadd.f32 %v1192, %v2284
    %v2286 = vpop.f32.mrf.mxu0
    %2287 = vmatprep.mubr.f32.mxu0 0.0
    %2288 = vmatmul.mubr.f32.gmra.mxu0 %v1211
    %v2289 = vpop.f32.mrf.mxu0
    %v2290 = vadd.f32 %v1197, %v2289
    %v2291 = vpop.f32.mrf.mxu0
    %2292 = vmatprep.mubr.f32.mxu0 0.0
    %2293 = vmatmul.mubr.f32.gmra.mxu0 %v1214
    %v2294 = vpop.f32.mrf.mxu0
    %v2295 = vadd.f32 %v1202, %v2294
    %v2296 = vpop.f32.mrf.mxu0
    %2297 = vdwg.mxu0
    %s2298 = scalar_lea.vmem %s11, 32
    %2299 = vst.msk [vmem:[%s2298] sm:$0xff] %vm173, %v2280
    %2300 = vst.msk [vmem:[%s2298 + $0x8] sm:$0xff] %vm173, %v2285
    %2301 = vst.msk [vmem:[%s2298 + $0x10] sm:$0xff] %vm173, %v2290
    %2302 = vst.msk [vmem:[%s2298 + $0x18] sm:$0xff] %vm173, %v2295
    // Predicated region
    $region70: #{forward.1} parent=1 // pred_check
      _
    $region71: #{forward.1} parent=1 // pred_check_branch
      %2304 = sbr.rel (0) target = $region73
    $region72: #{forward.1} parent=1 // pred_region
      _
    $region73: #{forward.1} parent=1 // pred_fallthru
      _
    // Predicated region
    $region74: #{forward.1} parent=1 // pred_check
      _
    $region75: #{forward.1} parent=1 // pred_check_branch
      %2306 = sbr.rel (0) target = $region77
    $region76: #{forward.1} parent=1 // pred_region
      _
    $region77: #{forward.1} parent=1 // pred_fallthru
      _
    %2307 = vsyncpa [#allocation5], 1
    %2308 = vsyncpa [#allocation7], 1
    %2309 = vsyncpa [#allocation10], 1
    %2310 = vsyncpa [#allocation13], 1

</llo_original>
